<compile_context>
chip_gen: v5e
topology: v5e:2x2
jax: 0.10.0
libtpu: 0.0.40
codegen_flags: <defaults>
</compile_context>

<pallas_src>
import functools

import numpy as np
import jax
import jax.numpy as jnp
from jax import lax
from jax.experimental import pallas as pl
from jax.experimental.pallas import tpu as pltpu


_VMEM = pl.BlockSpec(memory_space=pltpu.MemorySpace.VMEM)
_SMEM = pl.BlockSpec(memory_space=pltpu.MemorySpace.SMEM)


# --------------------------------------------------------------------------
# Single fused Pallas kernel: prep + full REINFORCE loop.
#   inputs : tc (SMEM int32[1]), S (T,L), filterbank (nb,T), W (L,C),
#            b (1,C), uniforms (num_batches*B, nb)
#   output : G = sum_j masks_j^T @ preds_j   (nb, C)
# --------------------------------------------------------------------------
def _fisurl_kernel(tc_ref, s_ref, fb_ref, w_ref, b_ref, u_ref, g_ref, *,
                   num_taps, num_banks, batch_size, num_batches, num_classes,
                   keep_ratio, alpha, beta, decay, lr, use_softmax):
    pad_l = (num_taps - 1) // 2

    W = w_ref[...]                                                  # (L, C)
    bias = b_ref[...]                                               # (1, C)

    # ---- prep: hoisted encoder projection of the filterbank --------------
    # SW = S @ W ; FW = filterbank @ SW   (never materialize (nb, L) filtered)
    SW = jnp.dot(s_ref[...], W, preferred_element_type=jnp.float32)  # (T, C)
    FW = jnp.dot(fb_ref[...], SW,
                 preferred_element_type=jnp.float32)                 # (nb, C)

    # Row pad_l of S is exactly the unpadded signal => pred0 = sig @ W + b.
    pred0 = SW[pad_l:pad_l + 1, :] + bias                            # (1, C)
    if use_softmax:
        pred0 = jax.nn.softmax(pred0, axis=-1)

    # Dynamic target-class column select (SMEM scalar, no recompile per class).
    tc = tc_ref[0]
    col_ids = lax.broadcasted_iota(jnp.int32, (1, num_classes), 1)
    tc_onehot = (col_ids == tc).astype(jnp.float32)                  # (1, C)
    pred0_tc = jnp.sum(pred0 * tc_onehot, axis=-1, keepdims=True)    # (1, 1)
    pred0_tc_b = jnp.broadcast_to(pred0_tc, (batch_size, 1))         # hoisted

    u_all = u_ref[...]                                               # (NB*B, nb)

    # ---- REINFORCE loop (fully unrolled, static trip count) --------------
    b1, b2, eps = 0.9, 0.999, 1e-8
    logits = jnp.zeros((1, num_banks), jnp.float32)
    m = jnp.zeros((1, num_banks), jnp.float32)
    v = jnp.zeros((1, num_banks), jnp.float32)
    bc1 = 1.0
    bc2 = 1.0
    baseline = jnp.zeros((1, 1), jnp.float32)
    masks_all = []
    preds_all = []

    for j in range(num_batches):
        p = jax.nn.sigmoid(logits)                                   # (1, nb)

        # Bernoulli(p) masks from the pre-drawn uniforms (draw hoisted out of
        # the serial logits -> p -> masks chain).
        u = u_all[j * batch_size:(j + 1) * batch_size, :]            # (B, nb)
        masks = (u < p).astype(jnp.float32)                          # (B, nb)

        preds = jnp.dot(masks, FW,
                        preferred_element_type=jnp.float32) + bias   # (B, C)
        if use_softmax:
            preds = jax.nn.softmax(preds, axis=-1)

        masks_all.append(masks)
        preds_all.append(preds)

        # Rewards.
        pred_tc = jnp.sum(preds * tc_onehot, axis=-1, keepdims=True)  # (B, 1)
        faith = -jnp.abs(pred0_tc_b - pred_tc)                        # (B, 1)
        mask_sizes = jnp.mean(masks, axis=-1, keepdims=True)          # (B, 1)
        sparsity = jnp.maximum(mask_sizes - keep_ratio, 0.0)          # (B, 1)
        rewards = alpha * faith - beta * sparsity                     # (B, 1)

        mean_reward = jnp.mean(rewards, axis=0, keepdims=True)        # (1, 1)
        baseline = decay * baseline + (1.0 - decay) * mean_reward     # torch order
        adv = rewards - baseline                                      # (B, 1)

        # Analytic REINFORCE gradient of -mean(adv * log_prob) wrt logits.
        grad = -jnp.mean(adv * (masks - p), axis=0, keepdims=True)    # (1, nb)

        # Adam (torch defaults); bias-correction powers folded at trace time.
        bc1 = bc1 * b1
        bc2 = bc2 * b2
        m = b1 * m + (1.0 - b1) * grad
        v = b2 * v + (1.0 - b2) * grad * grad
        m_hat = m / (1.0 - bc1)
        v_hat = v / (1.0 - bc2)
        logits = logits - lr * m_hat / (jnp.sqrt(v_hat) + eps)

    # Deferred saliency: one contraction instead of one per iteration.
    masks_cat = jnp.concatenate(masks_all, axis=0)                    # (NB*B, nb)
    preds_cat = jnp.concatenate(preds_all, axis=0)                    # (NB*B, C)
    g_ref[...] = lax.dot_general(masks_cat, preds_cat,
                                 (((0,), (0,)), ((), ())),
                                 preferred_element_type=jnp.float32)  # (nb, C)


# --------------------------------------------------------------------------
# Trace-time constants (numpy; folded into the jitted program)
# --------------------------------------------------------------------------
def create_fir_filterbank(num_banks, num_taps):
    """Deterministic windowed-sinc bandpass filterbank (num_banks, num_taps)."""
    n = np.arange(num_taps) - (num_taps - 1) / 2.0
    win = np.hamming(num_taps)
    bw = 0.5 / num_banks  # normalized bandwidth (nyquist = 0.5)
    banks = []
    for i in range(num_banks):
        fl, fh = i * bw, (i + 1) * bw
        h = 2 * fh * np.sinc(2 * fh * n) - 2 * fl * np.sinc(2 * fl * n)
        banks.append(h * win)
    return np.stack(banks).astype(np.float32)


def make_upsample_matrix(num_banks, sig_len):
    """One-hot bank -> rfft-bin matrix reproducing the torch masks_up loop."""
    F = sig_len // 2 + 1
    bandwidth = sig_len / 2 / num_banks
    U = np.zeros((num_banks, F), np.float32)
    index = 0
    for i in range(1, num_banks + 1):
        nxt = int(np.ceil(i * bandwidth))
        U[i - 1, index:nxt] = 1.0
        index = nxt
    return U


# --------------------------------------------------------------------------
# Whole forward in ONE jitted program (single dispatch, single pallas_call)
# --------------------------------------------------------------------------
@functools.partial(
    jax.jit,
    static_argnames=("num_taps", "num_banks", "batch_size", "num_batches",
                     "keep_ratio", "lr", "alpha", "beta", "decay",
                     "use_softmax"))
def fisurl_forward(input_data, target_class, key, encoder_W, encoder_b, *,
                   num_taps=31, num_banks=8, batch_size=8, num_batches=6,
                   keep_ratio=0.05, lr=1e-4, alpha=1.0, beta=0.01, decay=0.9,
                   use_softmax=False):
    """input_data: (1, 1, L) float32 (torch's per-sample input)."""
    L = int(input_data.shape[-1])
    C = int(encoder_W.shape[1])
    assert num_banks <= 128

    sig = input_data.reshape(1, L).astype(jnp.float32)

    # im2col shifted-signal matrix for 'same' correlation: S[k, t] = sig_pad[t+k]
    # (built from static slices; fused into the same jitted program).
    pad_l = (num_taps - 1) // 2
    pad_r = num_taps - 1 - pad_l
    sig_pad = jnp.pad(sig[0], (pad_l, pad_r))                       # (L + T - 1,)
    S = jnp.stack([lax.slice_in_dim(sig_pad, k, k + L)
                   for k in range(num_taps)], axis=0)               # (T, L)

    filterbank = jnp.asarray(create_fir_filterbank(num_banks, num_taps))
    U = jnp.asarray(make_upsample_matrix(num_banks, L))             # (nb, F)

    # All Bernoulli uniforms drawn up front (independent of the logits).
    uniforms = jax.random.uniform(
        key, (num_batches * batch_size, num_banks), dtype=jnp.float32)

    tc = jnp.asarray(target_class, jnp.int32).reshape((1,))

    kernel = functools.partial(
        _fisurl_kernel,
        num_taps=num_taps, num_banks=num_banks, batch_size=batch_size,
        num_batches=num_batches, num_classes=C, keep_ratio=float(keep_ratio),
        alpha=float(alpha), beta=float(beta), decay=float(decay),
        lr=float(lr), use_softmax=use_softmax)

    G = pl.pallas_call(
        kernel,
        out_shape=jax.ShapeDtypeStruct((num_banks, C), jnp.float32),
        in_specs=[_SMEM, _VMEM, _VMEM, _VMEM, _VMEM, _VMEM],
        out_specs=_VMEM,
    )(tc, S, filterbank,
      encoder_W.astype(jnp.float32), encoder_b.astype(jnp.float32), uniforms)

    # Constant upsample applied once:  sal_sum = U^T @ G   (F, C).
    sal_sum = U.T @ G                                               # (F, C)

    importance = jnp.take(sal_sum, tc[0], axis=1)
    importance = importance / float(num_batches * batch_size)
    lo = importance.min()
    denom = importance.max() - lo
    importance = (importance - lo) / jnp.where(denom > 0, denom, 1.0)
    return importance


# --------------------------------------------------------------------------
if __name__ == "__main__":
    key = jax.random.PRNGKey(0)
    k_sig, k_w, k_loop = jax.random.split(key, 3)

    L = 256            # signal length  -> F = 129 rfft bins
    C = 4              # number of classes
    num_banks = 8
    num_taps = 31
    batch_size = 8
    num_batches = 6
    target_class = 1

    # deterministic synthetic inputs / parameters
    input_data = jax.random.normal(k_sig, (1, 1, L), dtype=jnp.float32)
    encoder_W = 0.05 * jax.random.normal(k_w, (L, C), dtype=jnp.float32)
    encoder_b = jnp.zeros((1, C), jnp.float32)

    importance = fisurl_forward(
        input_data, jnp.int32(target_class), k_loop, encoder_W, encoder_b,
        num_taps=num_taps, num_banks=num_banks,
        batch_size=batch_size, num_batches=num_batches,
        keep_ratio=0.05, lr=1e-4, alpha=1.0, beta=0.01, decay=0.9,
        use_softmax=False)

    importance = jax.block_until_ready(importance)
    assert importance.shape == (L // 2 + 1,)
    assert bool(jnp.all(jnp.isfinite(importance)))
    assert float(importance.min()) >= -1e-6 and float(importance.max()) <= 1 + 1e-6
    print("KERNEL_OK")
</pallas_src>

<mosaic_0001>
module attributes {stable_mosaic.version = 11 : i64} {
  func.func @_fisurl_kernel(%arg0: memref<1xi32, #tpu.memory_space<smem>>, %arg1: memref<31x256xf32, #tpu.memory_space<vmem>>, %arg2: memref<8x31xf32, #tpu.memory_space<vmem>>, %arg3: memref<256x4xf32, #tpu.memory_space<vmem>>, %arg4: memref<1x4xf32, #tpu.memory_space<vmem>>, %arg5: memref<48x8xf32, #tpu.memory_space<vmem>>, %arg6: memref<8x4xf32, #tpu.memory_space<vmem>>) attributes {dimension_semantics = [], scalar_prefetch = 0 : i64, scratch_operands = 0 : i64, tpu.core_type = #tpu.core_type<tc>} {
    %c0 = arith.constant 0 : index
    %c0_0 = arith.constant 0 : index
    %0 = vector.load %arg3[%c0, %c0_0] : memref<256x4xf32, #tpu.memory_space<vmem>>, vector<256x4xf32>
    %c0_1 = arith.constant 0 : index
    %c0_2 = arith.constant 0 : index
    %1 = vector.load %arg4[%c0_1, %c0_2] : memref<1x4xf32, #tpu.memory_space<vmem>>, vector<1x4xf32>
    %c0_3 = arith.constant 0 : index
    %c0_4 = arith.constant 0 : index
    %2 = vector.load %arg1[%c0_3, %c0_4] : memref<31x256xf32, #tpu.memory_space<vmem>>, vector<31x256xf32>
    %cst = arith.constant dense<0.000000e+00> : vector<31x4xf32>
    %3 = tpu.matmul %2, %0, %cst {dimension_numbers = #tpu.dot_dimension_numbers<[1], [0], [0], [1], [0, 0, 1, 1], [], []>} : vector<31x256xf32>, vector<256x4xf32>, vector<31x4xf32> -> vector<31x4xf32>
    %c0_5 = arith.constant 0 : index
    %c0_6 = arith.constant 0 : index
    %4 = vector.load %arg2[%c0_5, %c0_6] : memref<8x31xf32, #tpu.memory_space<vmem>>, vector<8x31xf32>
    %cst_7 = arith.constant dense<0.000000e+00> : vector<8x4xf32>
    %5 = tpu.matmul %4, %3, %cst_7 {dimension_numbers = #tpu.dot_dimension_numbers<[1], [0], [0], [1], [0, 0, 1, 1], [], []>} : vector<8x31xf32>, vector<31x4xf32>, vector<8x4xf32> -> vector<8x4xf32>
    %6 = vector.extract_strided_slice %3 {offsets = [15, 0], sizes = [1, 4], strides = [1, 1]} : vector<31x4xf32> to vector<1x4xf32>
    %7 = arith.addf %6, %1 : vector<1x4xf32>
    %c0_8 = arith.constant 0 : index
    %8 = memref.load %arg0[%c0_8] : memref<1xi32, #tpu.memory_space<smem>>
    %9 = tpu.iota {dimensions = array<i32: 1>} : vector<1x4xi32>
    %10 = vector.broadcast %8 : i32 to vector<1x4xi32>
    %11 = arith.cmpi eq, %9, %10 : vector<1x4xi32>
    %12 = arith.extui %11 : vector<1x4xi1> to vector<1x4xi32>
    %13 = arith.sitofp %12 : vector<1x4xi32> to vector<1x4xf32>
    %14 = arith.mulf %7, %13 : vector<1x4xf32>
    %cst_9 = arith.constant dense<0.000000e+00> : vector<1xf32>
    %15 = vector.multi_reduction <add>, %14, %cst_9 [1] : vector<1x4xf32> to vector<1xf32>
    %16 = vector.shape_cast %15 : vector<1xf32> to vector<1x1xf32>
    %17 = vector.shape_cast %16 : vector<1x1xf32> to vector<1x1xf32>
    %18 = vector.broadcast %17 : vector<1x1xf32> to vector<8x1xf32>
    %c0_10 = arith.constant 0 : index
    %c0_11 = arith.constant 0 : index
    %19 = vector.load %arg5[%c0_10, %c0_11] : memref<48x8xf32, #tpu.memory_space<vmem>>, vector<48x8xf32>
    %cst_12 = arith.constant 0.000000e+00 : f32
    %20 = vector.broadcast %cst_12 : f32 to vector<1x8xf32>
    %cst_13 = arith.constant 0.000000e+00 : f32
    %21 = vector.broadcast %cst_13 : f32 to vector<1x8xf32>
    %cst_14 = arith.constant 0.000000e+00 : f32
    %22 = vector.broadcast %cst_14 : f32 to vector<1x8xf32>
    %cst_15 = arith.constant 0.000000e+00 : f32
    %23 = vector.broadcast %cst_15 : f32 to vector<1x1xf32>
    %24 = arith.negf %20 : vector<1x8xf32>
    %25 = math.exp %24 : vector<1x8xf32>
    %cst_16 = arith.constant 1.000000e+00 : f32
    %26 = vector.broadcast %cst_16 : f32 to vector<1x8xf32>
    %27 = arith.addf %26, %25 : vector<1x8xf32>
    %28 = arith.divf %26, %27 : vector<1x8xf32>
    %29 = vector.extract_strided_slice %19 {offsets = [0, 0], sizes = [8, 8], strides = [1, 1]} : vector<48x8xf32> to vector<8x8xf32>
    %30 = vector.broadcast %28 : vector<1x8xf32> to vector<8x8xf32>
    %31 = arith.cmpf olt, %29, %30 : vector<8x8xf32>
    %32 = arith.extui %31 : vector<8x8xi1> to vector<8x8xi32>
    %33 = arith.sitofp %32 : vector<8x8xi32> to vector<8x8xf32>
    %cst_17 = arith.constant dense<0.000000e+00> : vector<8x4xf32>
    %34 = tpu.matmul %33, %5, %cst_17 {dimension_numbers = #tpu.dot_dimension_numbers<[1], [0], [0], [1], [0, 0, 1, 1], [], []>} : vector<8x8xf32>, vector<8x4xf32>, vector<8x4xf32> -> vector<8x4xf32>
    %35 = vector.broadcast %1 : vector<1x4xf32> to vector<8x4xf32>
    %36 = arith.addf %34, %35 : vector<8x4xf32>
    %37 = vector.broadcast %13 : vector<1x4xf32> to vector<8x4xf32>
    %38 = arith.mulf %36, %37 : vector<8x4xf32>
    %cst_18 = arith.constant dense<0.000000e+00> : vector<8xf32>
    %39 = vector.multi_reduction <add>, %38, %cst_18 [1] : vector<8x4xf32> to vector<8xf32>
    %40 = vector.shape_cast %39 : vector<8xf32> to vector<8x1xf32>
    %41 = arith.subf %18, %40 : vector<8x1xf32>
    %42 = math.absf %41 : vector<8x1xf32>
    %cst_19 = arith.constant 0.000000e+00 : f32
    %43 = vector.broadcast %cst_19 : f32 to vector<8x1xf32>
    %44 = arith.subf %43, %42 : vector<8x1xf32>
    %cst_20 = arith.constant dense<0.000000e+00> : vector<8xf32>
    %45 = vector.multi_reduction <add>, %33, %cst_20 [1] : vector<8x8xf32> to vector<8xf32>
    %46 = vector.shape_cast %45 : vector<8xf32> to vector<8x1xf32>
    %cst_21 = arith.constant 8.000000e+00 : f32
    %47 = vector.broadcast %cst_21 : f32 to vector<8x1xf32>
    %48 = arith.divf %46, %47 : vector<8x1xf32>
    %cst_22 = arith.constant 5.000000e-02 : f32
    %49 = vector.broadcast %cst_22 : f32 to vector<8x1xf32>
    %50 = arith.subf %48, %49 : vector<8x1xf32>
    %cst_23 = arith.constant 0.000000e+00 : f32
    %51 = vector.broadcast %cst_23 : f32 to vector<8x1xf32>
    %52 = arith.maximumf %50, %51 : vector<8x1xf32>
    %cst_24 = arith.constant 1.000000e+00 : f32
    %53 = vector.broadcast %cst_24 : f32 to vector<8x1xf32>
    %54 = arith.mulf %53, %44 : vector<8x1xf32>
    %cst_25 = arith.constant 0.00999999977 : f32
    %55 = vector.broadcast %cst_25 : f32 to vector<8x1xf32>
    %56 = arith.mulf %55, %52 : vector<8x1xf32>
    %57 = arith.subf %54, %56 : vector<8x1xf32>
    %cst_26 = arith.constant dense<0.000000e+00> : vector<1xf32>
    %58 = vector.multi_reduction <add>, %57, %cst_26 [0] : vector<8x1xf32> to vector<1xf32>
    %59 = vector.shape_cast %58 : vector<1xf32> to vector<1x1xf32>
    %cst_27 = arith.constant 8.000000e+00 : f32
    %60 = vector.broadcast %cst_27 : f32 to vector<1x1xf32>
    %61 = arith.divf %59, %60 : vector<1x1xf32>
    %cst_28 = arith.constant 0.899999976 : f32
    %62 = vector.broadcast %cst_28 : f32 to vector<1x1xf32>
    %63 = arith.mulf %62, %23 : vector<1x1xf32>
    %cst_29 = arith.constant 1.000000e-01 : f32
    %64 = vector.broadcast %cst_29 : f32 to vector<1x1xf32>
    %65 = arith.mulf %64, %61 : vector<1x1xf32>
    %66 = arith.addf %63, %65 : vector<1x1xf32>
    %67 = vector.broadcast %66 : vector<1x1xf32> to vector<8x1xf32>
    %68 = arith.subf %57, %67 : vector<8x1xf32>
    %69 = vector.broadcast %28 : vector<1x8xf32> to vector<8x8xf32>
    %70 = arith.subf %33, %69 : vector<8x8xf32>
    %71 = vector.broadcast %68 : vector<8x1xf32> to vector<8x8xf32>
    %72 = arith.mulf %71, %70 : vector<8x8xf32>
    %cst_30 = arith.constant dense<0.000000e+00> : vector<8xf32>
    %73 = vector.multi_reduction <add>, %72, %cst_30 [0] : vector<8x8xf32> to vector<8xf32>
    %74 = vector.shape_cast %73 : vector<8xf32> to vector<1x8xf32>
    %cst_31 = arith.constant 8.000000e+00 : f32
    %75 = vector.broadcast %cst_31 : f32 to vector<1x8xf32>
    %76 = arith.divf %74, %75 : vector<1x8xf32>
    %cst_32 = arith.constant 0.000000e+00 : f32
    %77 = vector.broadcast %cst_32 : f32 to vector<1x8xf32>
    %78 = arith.subf %77, %76 : vector<1x8xf32>
    %cst_33 = arith.constant 0.899999976 : f32
    %79 = vector.broadcast %cst_33 : f32 to vector<1x8xf32>
    %80 = arith.mulf %79, %21 : vector<1x8xf32>
    %cst_34 = arith.constant 1.000000e-01 : f32
    %81 = vector.broadcast %cst_34 : f32 to vector<1x8xf32>
    %82 = arith.mulf %81, %78 : vector<1x8xf32>
    %83 = arith.addf %80, %82 : vector<1x8xf32>
    %cst_35 = arith.constant 9.990000e-01 : f32
    %84 = vector.broadcast %cst_35 : f32 to vector<1x8xf32>
    %85 = arith.mulf %84, %22 : vector<1x8xf32>
    %cst_36 = arith.constant 1.000000e-03 : f32
    %86 = vector.broadcast %cst_36 : f32 to vector<1x8xf32>
    %87 = arith.mulf %86, %78 : vector<1x8xf32>
    %88 = arith.mulf %87, %78 : vector<1x8xf32>
    %89 = arith.addf %85, %88 : vector<1x8xf32>
    %cst_37 = arith.constant 1.000000e-01 : f32
    %90 = vector.broadcast %cst_37 : f32 to vector<1x8xf32>
    %91 = arith.divf %83, %90 : vector<1x8xf32>
    %cst_38 = arith.constant 1.000000e-03 : f32
    %92 = vector.broadcast %cst_38 : f32 to vector<1x8xf32>
    %93 = arith.divf %89, %92 : vector<1x8xf32>
    %cst_39 = arith.constant 9.99999974E-5 : f32
    %94 = vector.broadcast %cst_39 : f32 to vector<1x8xf32>
    %95 = arith.mulf %94, %91 : vector<1x8xf32>
    %96 = math.sqrt %93 : vector<1x8xf32>
    %cst_40 = arith.constant 9.99999993E-9 : f32
    %97 = vector.broadcast %cst_40 : f32 to vector<1x8xf32>
    %98 = arith.addf %96, %97 : vector<1x8xf32>
    %99 = arith.divf %95, %98 : vector<1x8xf32>
    %100 = arith.subf %20, %99 : vector<1x8xf32>
    %101 = arith.negf %100 : vector<1x8xf32>
    %102 = math.exp %101 : vector<1x8xf32>
    %cst_41 = arith.constant 1.000000e+00 : f32
    %103 = vector.broadcast %cst_41 : f32 to vector<1x8xf32>
    %104 = arith.addf %103, %102 : vector<1x8xf32>
    %105 = arith.divf %103, %104 : vector<1x8xf32>
    %106 = vector.extract_strided_slice %19 {offsets = [8, 0], sizes = [8, 8], strides = [1, 1]} : vector<48x8xf32> to vector<8x8xf32>
    %107 = vector.broadcast %105 : vector<1x8xf32> to vector<8x8xf32>
    %108 = arith.cmpf olt, %106, %107 : vector<8x8xf32>
    %109 = arith.extui %108 : vector<8x8xi1> to vector<8x8xi32>
    %110 = arith.sitofp %109 : vector<8x8xi32> to vector<8x8xf32>
    %cst_42 = arith.constant dense<0.000000e+00> : vector<8x4xf32>
    %111 = tpu.matmul %110, %5, %cst_42 {dimension_numbers = #tpu.dot_dimension_numbers<[1], [0], [0], [1], [0, 0, 1, 1], [], []>} : vector<8x8xf32>, vector<8x4xf32>, vector<8x4xf32> -> vector<8x4xf32>
    %112 = vector.broadcast %1 : vector<1x4xf32> to vector<8x4xf32>
    %113 = arith.addf %111, %112 : vector<8x4xf32>
    %114 = vector.broadcast %13 : vector<1x4xf32> to vector<8x4xf32>
    %115 = arith.mulf %113, %114 : vector<8x4xf32>
    %cst_43 = arith.constant dense<0.000000e+00> : vector<8xf32>
    %116 = vector.multi_reduction <add>, %115, %cst_43 [1] : vector<8x4xf32> to vector<8xf32>
    %117 = vector.shape_cast %116 : vector<8xf32> to vector<8x1xf32>
    %118 = arith.subf %18, %117 : vector<8x1xf32>
    %119 = math.absf %118 : vector<8x1xf32>
    %cst_44 = arith.constant 0.000000e+00 : f32
    %120 = vector.broadcast %cst_44 : f32 to vector<8x1xf32>
    %121 = arith.subf %120, %119 : vector<8x1xf32>
    %cst_45 = arith.constant dense<0.000000e+00> : vector<8xf32>
    %122 = vector.multi_reduction <add>, %110, %cst_45 [1] : vector<8x8xf32> to vector<8xf32>
    %123 = vector.shape_cast %122 : vector<8xf32> to vector<8x1xf32>
    %cst_46 = arith.constant 8.000000e+00 : f32
    %124 = vector.broadcast %cst_46 : f32 to vector<8x1xf32>
    %125 = arith.divf %123, %124 : vector<8x1xf32>
    %cst_47 = arith.constant 5.000000e-02 : f32
    %126 = vector.broadcast %cst_47 : f32 to vector<8x1xf32>
    %127 = arith.subf %125, %126 : vector<8x1xf32>
    %cst_48 = arith.constant 0.000000e+00 : f32
    %128 = vector.broadcast %cst_48 : f32 to vector<8x1xf32>
    %129 = arith.maximumf %127, %128 : vector<8x1xf32>
    %cst_49 = arith.constant 1.000000e+00 : f32
    %130 = vector.broadcast %cst_49 : f32 to vector<8x1xf32>
    %131 = arith.mulf %130, %121 : vector<8x1xf32>
    %cst_50 = arith.constant 0.00999999977 : f32
    %132 = vector.broadcast %cst_50 : f32 to vector<8x1xf32>
    %133 = arith.mulf %132, %129 : vector<8x1xf32>
    %134 = arith.subf %131, %133 : vector<8x1xf32>
    %cst_51 = arith.constant dense<0.000000e+00> : vector<1xf32>
    %135 = vector.multi_reduction <add>, %134, %cst_51 [0] : vector<8x1xf32> to vector<1xf32>
    %136 = vector.shape_cast %135 : vector<1xf32> to vector<1x1xf32>
    %cst_52 = arith.constant 8.000000e+00 : f32
    %137 = vector.broadcast %cst_52 : f32 to vector<1x1xf32>
    %138 = arith.divf %136, %137 : vector<1x1xf32>
    %cst_53 = arith.constant 0.899999976 : f32
    %139 = vector.broadcast %cst_53 : f32 to vector<1x1xf32>
    %140 = arith.mulf %139, %66 : vector<1x1xf32>
    %cst_54 = arith.constant 1.000000e-01 : f32
    %141 = vector.broadcast %cst_54 : f32 to vector<1x1xf32>
    %142 = arith.mulf %141, %138 : vector<1x1xf32>
    %143 = arith.addf %140, %142 : vector<1x1xf32>
    %144 = vector.broadcast %143 : vector<1x1xf32> to vector<8x1xf32>
    %145 = arith.subf %134, %144 : vector<8x1xf32>
    %146 = vector.broadcast %105 : vector<1x8xf32> to vector<8x8xf32>
    %147 = arith.subf %110, %146 : vector<8x8xf32>
    %148 = vector.broadcast %145 : vector<8x1xf32> to vector<8x8xf32>
    %149 = arith.mulf %148, %147 : vector<8x8xf32>
    %cst_55 = arith.constant dense<0.000000e+00> : vector<8xf32>
    %150 = vector.multi_reduction <add>, %149, %cst_55 [0] : vector<8x8xf32> to vector<8xf32>
    %151 = vector.shape_cast %150 : vector<8xf32> to vector<1x8xf32>
    %cst_56 = arith.constant 8.000000e+00 : f32
    %152 = vector.broadcast %cst_56 : f32 to vector<1x8xf32>
    %153 = arith.divf %151, %152 : vector<1x8xf32>
    %cst_57 = arith.constant 0.000000e+00 : f32
    %154 = vector.broadcast %cst_57 : f32 to vector<1x8xf32>
    %155 = arith.subf %154, %153 : vector<1x8xf32>
    %cst_58 = arith.constant 0.899999976 : f32
    %156 = vector.broadcast %cst_58 : f32 to vector<1x8xf32>
    %157 = arith.mulf %156, %83 : vector<1x8xf32>
    %cst_59 = arith.constant 1.000000e-01 : f32
    %158 = vector.broadcast %cst_59 : f32 to vector<1x8xf32>
    %159 = arith.mulf %158, %155 : vector<1x8xf32>
    %160 = arith.addf %157, %159 : vector<1x8xf32>
    %cst_60 = arith.constant 9.990000e-01 : f32
    %161 = vector.broadcast %cst_60 : f32 to vector<1x8xf32>
    %162 = arith.mulf %161, %89 : vector<1x8xf32>
    %cst_61 = arith.constant 1.000000e-03 : f32
    %163 = vector.broadcast %cst_61 : f32 to vector<1x8xf32>
    %164 = arith.mulf %163, %155 : vector<1x8xf32>
    %165 = arith.mulf %164, %155 : vector<1x8xf32>
    %166 = arith.addf %162, %165 : vector<1x8xf32>
    %cst_62 = arith.constant 1.900000e-01 : f32
    %167 = vector.broadcast %cst_62 : f32 to vector<1x8xf32>
    %168 = arith.divf %160, %167 : vector<1x8xf32>
    %cst_63 = arith.constant 1.999000e-03 : f32
    %169 = vector.broadcast %cst_63 : f32 to vector<1x8xf32>
    %170 = arith.divf %166, %169 : vector<1x8xf32>
    %cst_64 = arith.constant 9.99999974E-5 : f32
    %171 = vector.broadcast %cst_64 : f32 to vector<1x8xf32>
    %172 = arith.mulf %171, %168 : vector<1x8xf32>
    %173 = math.sqrt %170 : vector<1x8xf32>
    %cst_65 = arith.constant 9.99999993E-9 : f32
    %174 = vector.broadcast %cst_65 : f32 to vector<1x8xf32>
    %175 = arith.addf %173, %174 : vector<1x8xf32>
    %176 = arith.divf %172, %175 : vector<1x8xf32>
    %177 = arith.subf %100, %176 : vector<1x8xf32>
    %178 = arith.negf %177 : vector<1x8xf32>
    %179 = math.exp %178 : vector<1x8xf32>
    %cst_66 = arith.constant 1.000000e+00 : f32
    %180 = vector.broadcast %cst_66 : f32 to vector<1x8xf32>
    %181 = arith.addf %180, %179 : vector<1x8xf32>
    %182 = arith.divf %180, %181 : vector<1x8xf32>
    %183 = vector.extract_strided_slice %19 {offsets = [16, 0], sizes = [8, 8], strides = [1, 1]} : vector<48x8xf32> to vector<8x8xf32>
    %184 = vector.broadcast %182 : vector<1x8xf32> to vector<8x8xf32>
    %185 = arith.cmpf olt, %183, %184 : vector<8x8xf32>
    %186 = arith.extui %185 : vector<8x8xi1> to vector<8x8xi32>
    %187 = arith.sitofp %186 : vector<8x8xi32> to vector<8x8xf32>
    %cst_67 = arith.constant dense<0.000000e+00> : vector<8x4xf32>
    %188 = tpu.matmul %187, %5, %cst_67 {dimension_numbers = #tpu.dot_dimension_numbers<[1], [0], [0], [1], [0, 0, 1, 1], [], []>} : vector<8x8xf32>, vector<8x4xf32>, vector<8x4xf32> -> vector<8x4xf32>
    %189 = vector.broadcast %1 : vector<1x4xf32> to vector<8x4xf32>
    %190 = arith.addf %188, %189 : vector<8x4xf32>
    %191 = vector.broadcast %13 : vector<1x4xf32> to vector<8x4xf32>
    %192 = arith.mulf %190, %191 : vector<8x4xf32>
    %cst_68 = arith.constant dense<0.000000e+00> : vector<8xf32>
    %193 = vector.multi_reduction <add>, %192, %cst_68 [1] : vector<8x4xf32> to vector<8xf32>
    %194 = vector.shape_cast %193 : vector<8xf32> to vector<8x1xf32>
    %195 = arith.subf %18, %194 : vector<8x1xf32>
    %196 = math.absf %195 : vector<8x1xf32>
    %cst_69 = arith.constant 0.000000e+00 : f32
    %197 = vector.broadcast %cst_69 : f32 to vector<8x1xf32>
    %198 = arith.subf %197, %196 : vector<8x1xf32>
    %cst_70 = arith.constant dense<0.000000e+00> : vector<8xf32>
    %199 = vector.multi_reduction <add>, %187, %cst_70 [1] : vector<8x8xf32> to vector<8xf32>
    %200 = vector.shape_cast %199 : vector<8xf32> to vector<8x1xf32>
    %cst_71 = arith.constant 8.000000e+00 : f32
    %201 = vector.broadcast %cst_71 : f32 to vector<8x1xf32>
    %202 = arith.divf %200, %201 : vector<8x1xf32>
    %cst_72 = arith.constant 5.000000e-02 : f32
    %203 = vector.broadcast %cst_72 : f32 to vector<8x1xf32>
    %204 = arith.subf %202, %203 : vector<8x1xf32>
    %cst_73 = arith.constant 0.000000e+00 : f32
    %205 = vector.broadcast %cst_73 : f32 to vector<8x1xf32>
    %206 = arith.maximumf %204, %205 : vector<8x1xf32>
    %cst_74 = arith.constant 1.000000e+00 : f32
    %207 = vector.broadcast %cst_74 : f32 to vector<8x1xf32>
    %208 = arith.mulf %207, %198 : vector<8x1xf32>
    %cst_75 = arith.constant 0.00999999977 : f32
    %209 = vector.broadcast %cst_75 : f32 to vector<8x1xf32>
    %210 = arith.mulf %209, %206 : vector<8x1xf32>
    %211 = arith.subf %208, %210 : vector<8x1xf32>
    %cst_76 = arith.constant dense<0.000000e+00> : vector<1xf32>
    %212 = vector.multi_reduction <add>, %211, %cst_76 [0] : vector<8x1xf32> to vector<1xf32>
    %213 = vector.shape_cast %212 : vector<1xf32> to vector<1x1xf32>
    %cst_77 = arith.constant 8.000000e+00 : f32
    %214 = vector.broadcast %cst_77 : f32 to vector<1x1xf32>
    %215 = arith.divf %213, %214 : vector<1x1xf32>
    %cst_78 = arith.constant 0.899999976 : f32
    %216 = vector.broadcast %cst_78 : f32 to vector<1x1xf32>
    %217 = arith.mulf %216, %143 : vector<1x1xf32>
    %cst_79 = arith.constant 1.000000e-01 : f32
    %218 = vector.broadcast %cst_79 : f32 to vector<1x1xf32>
    %219 = arith.mulf %218, %215 : vector<1x1xf32>
    %220 = arith.addf %217, %219 : vector<1x1xf32>
    %221 = vector.broadcast %220 : vector<1x1xf32> to vector<8x1xf32>
    %222 = arith.subf %211, %221 : vector<8x1xf32>
    %223 = vector.broadcast %182 : vector<1x8xf32> to vector<8x8xf32>
    %224 = arith.subf %187, %223 : vector<8x8xf32>
    %225 = vector.broadcast %222 : vector<8x1xf32> to vector<8x8xf32>
    %226 = arith.mulf %225, %224 : vector<8x8xf32>
    %cst_80 = arith.constant dense<0.000000e+00> : vector<8xf32>
    %227 = vector.multi_reduction <add>, %226, %cst_80 [0] : vector<8x8xf32> to vector<8xf32>
    %228 = vector.shape_cast %227 : vector<8xf32> to vector<1x8xf32>
    %cst_81 = arith.constant 8.000000e+00 : f32
    %229 = vector.broadcast %cst_81 : f32 to vector<1x8xf32>
    %230 = arith.divf %228, %229 : vector<1x8xf32>
    %cst_82 = arith.constant 0.000000e+00 : f32
    %231 = vector.broadcast %cst_82 : f32 to vector<1x8xf32>
    %232 = arith.subf %231, %230 : vector<1x8xf32>
    %cst_83 = arith.constant 0.899999976 : f32
    %233 = vector.broadcast %cst_83 : f32 to vector<1x8xf32>
    %234 = arith.mulf %233, %160 : vector<1x8xf32>
    %cst_84 = arith.constant 1.000000e-01 : f32
    %235 = vector.broadcast %cst_84 : f32 to vector<1x8xf32>
    %236 = arith.mulf %235, %232 : vector<1x8xf32>
    %237 = arith.addf %234, %236 : vector<1x8xf32>
    %cst_85 = arith.constant 9.990000e-01 : f32
    %238 = vector.broadcast %cst_85 : f32 to vector<1x8xf32>
    %239 = arith.mulf %238, %166 : vector<1x8xf32>
    %cst_86 = arith.constant 1.000000e-03 : f32
    %240 = vector.broadcast %cst_86 : f32 to vector<1x8xf32>
    %241 = arith.mulf %240, %232 : vector<1x8xf32>
    %242 = arith.mulf %241, %232 : vector<1x8xf32>
    %243 = arith.addf %239, %242 : vector<1x8xf32>
    %cst_87 = arith.constant 2.710000e-01 : f32
    %244 = vector.broadcast %cst_87 : f32 to vector<1x8xf32>
    %245 = arith.divf %237, %244 : vector<1x8xf32>
    %cst_88 = arith.constant 0.00299700093 : f32
    %246 = vector.broadcast %cst_88 : f32 to vector<1x8xf32>
    %247 = arith.divf %243, %246 : vector<1x8xf32>
    %cst_89 = arith.constant 9.99999974E-5 : f32
    %248 = vector.broadcast %cst_89 : f32 to vector<1x8xf32>
    %249 = arith.mulf %248, %245 : vector<1x8xf32>
    %250 = math.sqrt %247 : vector<1x8xf32>
    %cst_90 = arith.constant 9.99999993E-9 : f32
    %251 = vector.broadcast %cst_90 : f32 to vector<1x8xf32>
    %252 = arith.addf %250, %251 : vector<1x8xf32>
    %253 = arith.divf %249, %252 : vector<1x8xf32>
    %254 = arith.subf %177, %253 : vector<1x8xf32>
    %255 = arith.negf %254 : vector<1x8xf32>
    %256 = math.exp %255 : vector<1x8xf32>
    %cst_91 = arith.constant 1.000000e+00 : f32
    %257 = vector.broadcast %cst_91 : f32 to vector<1x8xf32>
    %258 = arith.addf %257, %256 : vector<1x8xf32>
    %259 = arith.divf %257, %258 : vector<1x8xf32>
    %260 = vector.extract_strided_slice %19 {offsets = [24, 0], sizes = [8, 8], strides = [1, 1]} : vector<48x8xf32> to vector<8x8xf32>
    %261 = vector.broadcast %259 : vector<1x8xf32> to vector<8x8xf32>
    %262 = arith.cmpf olt, %260, %261 : vector<8x8xf32>
    %263 = arith.extui %262 : vector<8x8xi1> to vector<8x8xi32>
    %264 = arith.sitofp %263 : vector<8x8xi32> to vector<8x8xf32>
    %cst_92 = arith.constant dense<0.000000e+00> : vector<8x4xf32>
    %265 = tpu.matmul %264, %5, %cst_92 {dimension_numbers = #tpu.dot_dimension_numbers<[1], [0], [0], [1], [0, 0, 1, 1], [], []>} : vector<8x8xf32>, vector<8x4xf32>, vector<8x4xf32> -> vector<8x4xf32>
    %266 = vector.broadcast %1 : vector<1x4xf32> to vector<8x4xf32>
    %267 = arith.addf %265, %266 : vector<8x4xf32>
    %268 = vector.broadcast %13 : vector<1x4xf32> to vector<8x4xf32>
    %269 = arith.mulf %267, %268 : vector<8x4xf32>
    %cst_93 = arith.constant dense<0.000000e+00> : vector<8xf32>
    %270 = vector.multi_reduction <add>, %269, %cst_93 [1] : vector<8x4xf32> to vector<8xf32>
    %271 = vector.shape_cast %270 : vector<8xf32> to vector<8x1xf32>
    %272 = arith.subf %18, %271 : vector<8x1xf32>
    %273 = math.absf %272 : vector<8x1xf32>
    %cst_94 = arith.constant 0.000000e+00 : f32
    %274 = vector.broadcast %cst_94 : f32 to vector<8x1xf32>
    %275 = arith.subf %274, %273 : vector<8x1xf32>
    %cst_95 = arith.constant dense<0.000000e+00> : vector<8xf32>
    %276 = vector.multi_reduction <add>, %264, %cst_95 [1] : vector<8x8xf32> to vector<8xf32>
    %277 = vector.shape_cast %276 : vector<8xf32> to vector<8x1xf32>
    %cst_96 = arith.constant 8.000000e+00 : f32
    %278 = vector.broadcast %cst_96 : f32 to vector<8x1xf32>
    %279 = arith.divf %277, %278 : vector<8x1xf32>
    %cst_97 = arith.constant 5.000000e-02 : f32
    %280 = vector.broadcast %cst_97 : f32 to vector<8x1xf32>
    %281 = arith.subf %279, %280 : vector<8x1xf32>
    %cst_98 = arith.constant 0.000000e+00 : f32
    %282 = vector.broadcast %cst_98 : f32 to vector<8x1xf32>
    %283 = arith.maximumf %281, %282 : vector<8x1xf32>
    %cst_99 = arith.constant 1.000000e+00 : f32
    %284 = vector.broadcast %cst_99 : f32 to vector<8x1xf32>
    %285 = arith.mulf %284, %275 : vector<8x1xf32>
    %cst_100 = arith.constant 0.00999999977 : f32
    %286 = vector.broadcast %cst_100 : f32 to vector<8x1xf32>
    %287 = arith.mulf %286, %283 : vector<8x1xf32>
    %288 = arith.subf %285, %287 : vector<8x1xf32>
    %cst_101 = arith.constant dense<0.000000e+00> : vector<1xf32>
    %289 = vector.multi_reduction <add>, %288, %cst_101 [0] : vector<8x1xf32> to vector<1xf32>
    %290 = vector.shape_cast %289 : vector<1xf32> to vector<1x1xf32>
    %cst_102 = arith.constant 8.000000e+00 : f32
    %291 = vector.broadcast %cst_102 : f32 to vector<1x1xf32>
    %292 = arith.divf %290, %291 : vector<1x1xf32>
    %cst_103 = arith.constant 0.899999976 : f32
    %293 = vector.broadcast %cst_103 : f32 to vector<1x1xf32>
    %294 = arith.mulf %293, %220 : vector<1x1xf32>
    %cst_104 = arith.constant 1.000000e-01 : f32
    %295 = vector.broadcast %cst_104 : f32 to vector<1x1xf32>
    %296 = arith.mulf %295, %292 : vector<1x1xf32>
    %297 = arith.addf %294, %296 : vector<1x1xf32>
    %298 = vector.broadcast %297 : vector<1x1xf32> to vector<8x1xf32>
    %299 = arith.subf %288, %298 : vector<8x1xf32>
    %300 = vector.broadcast %259 : vector<1x8xf32> to vector<8x8xf32>
    %301 = arith.subf %264, %300 : vector<8x8xf32>
    %302 = vector.broadcast %299 : vector<8x1xf32> to vector<8x8xf32>
    %303 = arith.mulf %302, %301 : vector<8x8xf32>
    %cst_105 = arith.constant dense<0.000000e+00> : vector<8xf32>
    %304 = vector.multi_reduction <add>, %303, %cst_105 [0] : vector<8x8xf32> to vector<8xf32>
    %305 = vector.shape_cast %304 : vector<8xf32> to vector<1x8xf32>
    %cst_106 = arith.constant 8.000000e+00 : f32
    %306 = vector.broadcast %cst_106 : f32 to vector<1x8xf32>
    %307 = arith.divf %305, %306 : vector<1x8xf32>
    %cst_107 = arith.constant 0.000000e+00 : f32
    %308 = vector.broadcast %cst_107 : f32 to vector<1x8xf32>
    %309 = arith.subf %308, %307 : vector<1x8xf32>
    %cst_108 = arith.constant 0.899999976 : f32
    %310 = vector.broadcast %cst_108 : f32 to vector<1x8xf32>
    %311 = arith.mulf %310, %237 : vector<1x8xf32>
    %cst_109 = arith.constant 1.000000e-01 : f32
    %312 = vector.broadcast %cst_109 : f32 to vector<1x8xf32>
    %313 = arith.mulf %312, %309 : vector<1x8xf32>
    %314 = arith.addf %311, %313 : vector<1x8xf32>
    %cst_110 = arith.constant 9.990000e-01 : f32
    %315 = vector.broadcast %cst_110 : f32 to vector<1x8xf32>
    %316 = arith.mulf %315, %243 : vector<1x8xf32>
    %cst_111 = arith.constant 1.000000e-03 : f32
    %317 = vector.broadcast %cst_111 : f32 to vector<1x8xf32>
    %318 = arith.mulf %317, %309 : vector<1x8xf32>
    %319 = arith.mulf %318, %309 : vector<1x8xf32>
    %320 = arith.addf %316, %319 : vector<1x8xf32>
    %cst_112 = arith.constant 3.439000e-01 : f32
    %321 = vector.broadcast %cst_112 : f32 to vector<1x8xf32>
    %322 = arith.divf %314, %321 : vector<1x8xf32>
    %cst_113 = arith.constant 0.00399400387 : f32
    %323 = vector.broadcast %cst_113 : f32 to vector<1x8xf32>
    %324 = arith.divf %320, %323 : vector<1x8xf32>
    %cst_114 = arith.constant 9.99999974E-5 : f32
    %325 = vector.broadcast %cst_114 : f32 to vector<1x8xf32>
    %326 = arith.mulf %325, %322 : vector<1x8xf32>
    %327 = math.sqrt %324 : vector<1x8xf32>
    %cst_115 = arith.constant 9.99999993E-9 : f32
    %328 = vector.broadcast %cst_115 : f32 to vector<1x8xf32>
    %329 = arith.addf %327, %328 : vector<1x8xf32>
    %330 = arith.divf %326, %329 : vector<1x8xf32>
    %331 = arith.subf %254, %330 : vector<1x8xf32>
    %332 = arith.negf %331 : vector<1x8xf32>
    %333 = math.exp %332 : vector<1x8xf32>
    %cst_116 = arith.constant 1.000000e+00 : f32
    %334 = vector.broadcast %cst_116 : f32 to vector<1x8xf32>
    %335 = arith.addf %334, %333 : vector<1x8xf32>
    %336 = arith.divf %334, %335 : vector<1x8xf32>
    %337 = vector.extract_strided_slice %19 {offsets = [32, 0], sizes = [8, 8], strides = [1, 1]} : vector<48x8xf32> to vector<8x8xf32>
    %338 = vector.broadcast %336 : vector<1x8xf32> to vector<8x8xf32>
    %339 = arith.cmpf olt, %337, %338 : vector<8x8xf32>
    %340 = arith.extui %339 : vector<8x8xi1> to vector<8x8xi32>
    %341 = arith.sitofp %340 : vector<8x8xi32> to vector<8x8xf32>
    %cst_117 = arith.constant dense<0.000000e+00> : vector<8x4xf32>
    %342 = tpu.matmul %341, %5, %cst_117 {dimension_numbers = #tpu.dot_dimension_numbers<[1], [0], [0], [1], [0, 0, 1, 1], [], []>} : vector<8x8xf32>, vector<8x4xf32>, vector<8x4xf32> -> vector<8x4xf32>
    %343 = vector.broadcast %1 : vector<1x4xf32> to vector<8x4xf32>
    %344 = arith.addf %342, %343 : vector<8x4xf32>
    %345 = vector.broadcast %13 : vector<1x4xf32> to vector<8x4xf32>
    %346 = arith.mulf %344, %345 : vector<8x4xf32>
    %cst_118 = arith.constant dense<0.000000e+00> : vector<8xf32>
    %347 = vector.multi_reduction <add>, %346, %cst_118 [1] : vector<8x4xf32> to vector<8xf32>
    %348 = vector.shape_cast %347 : vector<8xf32> to vector<8x1xf32>
    %349 = arith.subf %18, %348 : vector<8x1xf32>
    %350 = math.absf %349 : vector<8x1xf32>
    %cst_119 = arith.constant 0.000000e+00 : f32
    %351 = vector.broadcast %cst_119 : f32 to vector<8x1xf32>
    %352 = arith.subf %351, %350 : vector<8x1xf32>
    %cst_120 = arith.constant dense<0.000000e+00> : vector<8xf32>
    %353 = vector.multi_reduction <add>, %341, %cst_120 [1] : vector<8x8xf32> to vector<8xf32>
    %354 = vector.shape_cast %353 : vector<8xf32> to vector<8x1xf32>
    %cst_121 = arith.constant 8.000000e+00 : f32
    %355 = vector.broadcast %cst_121 : f32 to vector<8x1xf32>
    %356 = arith.divf %354, %355 : vector<8x1xf32>
    %cst_122 = arith.constant 5.000000e-02 : f32
    %357 = vector.broadcast %cst_122 : f32 to vector<8x1xf32>
    %358 = arith.subf %356, %357 : vector<8x1xf32>
    %cst_123 = arith.constant 0.000000e+00 : f32
    %359 = vector.broadcast %cst_123 : f32 to vector<8x1xf32>
    %360 = arith.maximumf %358, %359 : vector<8x1xf32>
    %cst_124 = arith.constant 1.000000e+00 : f32
    %361 = vector.broadcast %cst_124 : f32 to vector<8x1xf32>
    %362 = arith.mulf %361, %352 : vector<8x1xf32>
    %cst_125 = arith.constant 0.00999999977 : f32
    %363 = vector.broadcast %cst_125 : f32 to vector<8x1xf32>
    %364 = arith.mulf %363, %360 : vector<8x1xf32>
    %365 = arith.subf %362, %364 : vector<8x1xf32>
    %cst_126 = arith.constant dense<0.000000e+00> : vector<1xf32>
    %366 = vector.multi_reduction <add>, %365, %cst_126 [0] : vector<8x1xf32> to vector<1xf32>
    %367 = vector.shape_cast %366 : vector<1xf32> to vector<1x1xf32>
    %cst_127 = arith.constant 8.000000e+00 : f32
    %368 = vector.broadcast %cst_127 : f32 to vector<1x1xf32>
    %369 = arith.divf %367, %368 : vector<1x1xf32>
    %cst_128 = arith.constant 0.899999976 : f32
    %370 = vector.broadcast %cst_128 : f32 to vector<1x1xf32>
    %371 = arith.mulf %370, %297 : vector<1x1xf32>
    %cst_129 = arith.constant 1.000000e-01 : f32
    %372 = vector.broadcast %cst_129 : f32 to vector<1x1xf32>
    %373 = arith.mulf %372, %369 : vector<1x1xf32>
    %374 = arith.addf %371, %373 : vector<1x1xf32>
    %375 = vector.broadcast %374 : vector<1x1xf32> to vector<8x1xf32>
    %376 = arith.subf %365, %375 : vector<8x1xf32>
    %377 = vector.broadcast %336 : vector<1x8xf32> to vector<8x8xf32>
    %378 = arith.subf %341, %377 : vector<8x8xf32>
    %379 = vector.broadcast %376 : vector<8x1xf32> to vector<8x8xf32>
    %380 = arith.mulf %379, %378 : vector<8x8xf32>
    %cst_130 = arith.constant dense<0.000000e+00> : vector<8xf32>
    %381 = vector.multi_reduction <add>, %380, %cst_130 [0] : vector<8x8xf32> to vector<8xf32>
    %382 = vector.shape_cast %381 : vector<8xf32> to vector<1x8xf32>
    %cst_131 = arith.constant 8.000000e+00 : f32
    %383 = vector.broadcast %cst_131 : f32 to vector<1x8xf32>
    %384 = arith.divf %382, %383 : vector<1x8xf32>
    %cst_132 = arith.constant 0.000000e+00 : f32
    %385 = vector.broadcast %cst_132 : f32 to vector<1x8xf32>
    %386 = arith.subf %385, %384 : vector<1x8xf32>
    %cst_133 = arith.constant 0.899999976 : f32
    %387 = vector.broadcast %cst_133 : f32 to vector<1x8xf32>
    %388 = arith.mulf %387, %314 : vector<1x8xf32>
    %cst_134 = arith.constant 1.000000e-01 : f32
    %389 = vector.broadcast %cst_134 : f32 to vector<1x8xf32>
    %390 = arith.mulf %389, %386 : vector<1x8xf32>
    %391 = arith.addf %388, %390 : vector<1x8xf32>
    %cst_135 = arith.constant 9.990000e-01 : f32
    %392 = vector.broadcast %cst_135 : f32 to vector<1x8xf32>
    %393 = arith.mulf %392, %320 : vector<1x8xf32>
    %cst_136 = arith.constant 1.000000e-03 : f32
    %394 = vector.broadcast %cst_136 : f32 to vector<1x8xf32>
    %395 = arith.mulf %394, %386 : vector<1x8xf32>
    %396 = arith.mulf %395, %386 : vector<1x8xf32>
    %397 = arith.addf %393, %396 : vector<1x8xf32>
    %cst_137 = arith.constant 4.095100e-01 : f32
    %398 = vector.broadcast %cst_137 : f32 to vector<1x8xf32>
    %399 = arith.divf %391, %398 : vector<1x8xf32>
    %cst_138 = arith.constant 4.990010e-03 : f32
    %400 = vector.broadcast %cst_138 : f32 to vector<1x8xf32>
    %401 = arith.divf %397, %400 : vector<1x8xf32>
    %cst_139 = arith.constant 9.99999974E-5 : f32
    %402 = vector.broadcast %cst_139 : f32 to vector<1x8xf32>
    %403 = arith.mulf %402, %399 : vector<1x8xf32>
    %404 = math.sqrt %401 : vector<1x8xf32>
    %cst_140 = arith.constant 9.99999993E-9 : f32
    %405 = vector.broadcast %cst_140 : f32 to vector<1x8xf32>
    %406 = arith.addf %404, %405 : vector<1x8xf32>
    %407 = arith.divf %403, %406 : vector<1x8xf32>
    %408 = arith.subf %331, %407 : vector<1x8xf32>
    %409 = arith.negf %408 : vector<1x8xf32>
    %410 = math.exp %409 : vector<1x8xf32>
    %cst_141 = arith.constant 1.000000e+00 : f32
    %411 = vector.broadcast %cst_141 : f32 to vector<1x8xf32>
    %412 = arith.addf %411, %410 : vector<1x8xf32>
    %413 = arith.divf %411, %412 : vector<1x8xf32>
    %414 = vector.extract_strided_slice %19 {offsets = [40, 0], sizes = [8, 8], strides = [1, 1]} : vector<48x8xf32> to vector<8x8xf32>
    %415 = vector.broadcast %413 : vector<1x8xf32> to vector<8x8xf32>
    %416 = arith.cmpf olt, %414, %415 : vector<8x8xf32>
    %417 = arith.extui %416 : vector<8x8xi1> to vector<8x8xi32>
    %418 = arith.sitofp %417 : vector<8x8xi32> to vector<8x8xf32>
    %cst_142 = arith.constant dense<0.000000e+00> : vector<8x4xf32>
    %419 = tpu.matmul %418, %5, %cst_142 {dimension_numbers = #tpu.dot_dimension_numbers<[1], [0], [0], [1], [0, 0, 1, 1], [], []>} : vector<8x8xf32>, vector<8x4xf32>, vector<8x4xf32> -> vector<8x4xf32>
    %420 = vector.broadcast %1 : vector<1x4xf32> to vector<8x4xf32>
    %421 = arith.addf %419, %420 : vector<8x4xf32>
    %422 = tpu.concatenate %33, %110, %187, %264, %341, %418 in 0 : vector<8x8xf32>, vector<8x8xf32>, vector<8x8xf32>, vector<8x8xf32>, vector<8x8xf32>, vector<8x8xf32> -> vector<48x8xf32>
    %423 = tpu.concatenate %36, %113, %190, %267, %344, %421 in 0 : vector<8x4xf32>, vector<8x4xf32>, vector<8x4xf32>, vector<8x4xf32>, vector<8x4xf32>, vector<8x4xf32> -> vector<48x4xf32>
    %cst_143 = arith.constant dense<0.000000e+00> : vector<8x4xf32>
    %424 = tpu.matmul %422, %423, %cst_143 {dimension_numbers = #tpu.dot_dimension_numbers<[0], [0], [1], [1], [0, 1, 1, 1], [], []>} : vector<48x8xf32>, vector<48x4xf32>, vector<8x4xf32> -> vector<8x4xf32>
    %c0_144 = arith.constant 0 : index
    %c0_145 = arith.constant 0 : index
    %425 = vector.load %arg6[%c0_144, %c0_145] : memref<8x4xf32, #tpu.memory_space<vmem>>, vector<8x4xf32>
    tpu.vector_store %arg6[%c0_144, %c0_145], %424 {strides = array<i32>} : memref<8x4xf32, #tpu.memory_space<vmem>>, vector<8x4xf32>,
    return
  }
}

</mosaic_0001>

<llo_original>
// kernel: fisurl_forward.1
$region0: #{fisurl_forward.1}
  #allocation0 [shape = 'u32[]', space=smem, size = 0x4, offset = 0x4, fixed_abs, tag = 'smem constant byte address 0x4 - core index']
  #allocation1 [shape = 'u32[72,128]{1,0:T(1,128)}', space=vmem, size = 0x9000, scoped, tag = 'internal scratch']
  #allocation2 [shape = 's32[1]{0:T(128)S(6)}', space=smem, size = 0x200, scoped, tag = 'scoped memory for fisurl_forward.1']
  %s0 = inlined_call_operand.<no memory space> [shape: s32[1], index: 0, kind: input, shape index: {}]
  %s1 = inlined_call_operand.vmem [shape: f32[31,256], index: 1, kind: input, shape index: {}]
  %s2 = inlined_call_operand.vmem [shape: f32[8,31], index: 2, kind: input, shape index: {}]
  %s3 = inlined_call_operand.vmem [shape: f32[256,4], index: 3, kind: input, shape index: {}]
  %s4 = inlined_call_operand.vmem [shape: f32[1,4], index: 4, kind: input, shape index: {}]
  %s5 = inlined_call_operand.vmem [shape: f32[48,8], index: 5, kind: input, shape index: {}]
  %s6 = inlined_call_operand.vmem [shape: f32[8,4], index: 6, kind: output, shape index: {}]
  %s7 = sld [smem:[#allocation0]]
  $region34: #{fisurl_forward.1} parent=0
    _
  %s9 = ssub.s32 1, %s7
  %s10 = scalar_select 0, %s9, %s7
  %11 = sst [smem:[#allocation2]] %s0
  // Predicated region
  $region2: #{fisurl_forward.1} parent=0 // pred_check
    _
  $region3: #{fisurl_forward.1} parent=0 // pred_check_branch
    %13 = sbr.rel (0) target = $region5
  $region4: #{fisurl_forward.1} parent=0 // pred_region
    _
  $region5: #{fisurl_forward.1} parent=0 // pred_fallthru
    _
  // Predicated region
  $region6: #{fisurl_forward.1} parent=0 // pred_check
    _
  $region7: #{fisurl_forward.1} parent=0 // pred_check_branch
    %15 = sbr.rel (0) target = $region9
  $region8: #{fisurl_forward.1} parent=0 // pred_region
    _
  $region9: #{fisurl_forward.1} parent=0 // pred_fallthru
    _
  // Predicated region
  $region10: #{fisurl_forward.1} parent=0 // pred_check
    _
  $region11: #{fisurl_forward.1} parent=0 // pred_check_branch
    %17 = sbr.rel (0) target = $region13
  $region12: #{fisurl_forward.1} parent=0 // pred_region
    _
  $region13: #{fisurl_forward.1} parent=0 // pred_fallthru
    _
  // Predicated region
  $region14: #{fisurl_forward.1} parent=0 // pred_check
    _
  $region15: #{fisurl_forward.1} parent=0 // pred_check_branch
    %19 = sbr.rel (0) target = $region17
  $region16: #{fisurl_forward.1} parent=0 // pred_region
    _
  $region17: #{fisurl_forward.1} parent=0 // pred_fallthru
    _
  // Predicated region
  $region18: #{fisurl_forward.1} parent=0 // pred_check
    _
  $region19: #{fisurl_forward.1} parent=0 // pred_check_branch
    %21 = sbr.rel (0) target = $region21
  $region20: #{fisurl_forward.1} parent=0 // pred_region
    _
  $region21: #{fisurl_forward.1} parent=0 // pred_fallthru
    _
  // Predicated region
  $region22: #{fisurl_forward.1} parent=0 // pred_check
    _
  $region23: #{fisurl_forward.1} parent=0 // pred_check_branch
    %23 = sbr.rel (0) target = $region25
  $region24: #{fisurl_forward.1} parent=0 // pred_region
    _
  $region25: #{fisurl_forward.1} parent=0 // pred_fallthru
    _
  %v24 = vld [vmem:[%s3] sm:$0xff]
  %v25 = vld [vmem:[%s3 + $0x8] sm:$0xff]
  %v26 = vld [vmem:[%s3 + $0x10] sm:$0xff]
  %v27 = vld [vmem:[%s3 + $0x18] sm:$0xff]
  %v28 = vld [vmem:[%s3 + $0x20] sm:$0xff]
  %v29 = vld [vmem:[%s3 + $0x28] sm:$0xff]
  %v30 = vld [vmem:[%s3 + $0x30] sm:$0xff]
  %v31 = vld [vmem:[%s3 + $0x38] sm:$0xff]
  %v32 = vld [vmem:[%s3 + $0x40] sm:$0xff]
  %v33 = vld [vmem:[%s3 + $0x48] sm:$0xff]
  %v34 = vld [vmem:[%s3 + $0x50] sm:$0xff]
  %v35 = vld [vmem:[%s3 + $0x58] sm:$0xff]
  %v36 = vld [vmem:[%s3 + $0x60] sm:$0xff]
  %v37 = vld [vmem:[%s3 + $0x68] sm:$0xff]
  %v38 = vld [vmem:[%s3 + $0x70] sm:$0xff]
  %v39 = vld [vmem:[%s3 + $0x78] sm:$0xff]
  %v40 = vld [vmem:[%s3 + $0x80] sm:$0xff]
  %v41 = vld [vmem:[%s3 + $0x88] sm:$0xff]
  %v42 = vld [vmem:[%s3 + $0x90] sm:$0xff]
  %v43 = vld [vmem:[%s3 + $0x98] sm:$0xff]
  %v44 = vld [vmem:[%s3 + $0xa0] sm:$0xff]
  %v45 = vld [vmem:[%s3 + $0xa8] sm:$0xff]
  %v46 = vld [vmem:[%s3 + $0xb0] sm:$0xff]
  %v47 = vld [vmem:[%s3 + $0xb8] sm:$0xff]
  %v48 = vld [vmem:[%s3 + $0xc0] sm:$0xff]
  %v49 = vld [vmem:[%s3 + $0xc8] sm:$0xff]
  %v50 = vld [vmem:[%s3 + $0xd0] sm:$0xff]
  %v51 = vld [vmem:[%s3 + $0xd8] sm:$0xff]
  %v52 = vld [vmem:[%s3 + $0xe0] sm:$0xff]
  %v53 = vld [vmem:[%s3 + $0xe8] sm:$0xff]
  %v54 = vld [vmem:[%s3 + $0xf0] sm:$0xff]
  %v55 = vld [vmem:[%s3 + $0xf8] sm:$0xff]
  %v56 = vld [vmem:[%s4] sm:$0x1]
  %v57 = vld [vmem:[%s1] sm:$0xff]
  %v58 = vld [vmem:[%s1 + $0x8] sm:$0xff]
  %v59 = vld [vmem:[%s1 + $0x10] sm:$0xff]
  %v60 = vld [vmem:[%s1 + $0x18] sm:$0xff]
  %v61 = vld [vmem:[%s1 + $0x20] sm:$0xff]
  %v62 = vld [vmem:[%s1 + $0x28] sm:$0xff]
  %v63 = vld [vmem:[%s1 + $0x30] sm:$0x7f]
  %v64 = vld [vmem:[%s1 + $0x38] sm:$0x7f]
  %65 = vmatpush.msra.mxu0 %v39
  %66 = vmatpush.msra.mxu0 %v38
  %67 = vmatpush.msra.mxu0 %v37
  %68 = vmatpush.msra.mxu0 %v36
  %69 = vmatpush.msra.mxu0 %v35
  %70 = vmatpush.msra.mxu0 %v34
  %71 = vmatpush.msra.mxu0 %v33
  %72 = vmatpush.msra.mxu0 %v32
  %73 = vmatpush.msra.mxu0 %v31
  %74 = vmatpush.msra.mxu0 %v30
  %75 = vmatpush.msra.mxu0 %v29
  %76 = vmatpush.msra.mxu0 %v28
  %77 = vmatpush.msra.mxu0 %v27
  %78 = vmatpush.msra.mxu0 %v26
  %79 = vmatpush.msra.mxu0 %v25
  %80 = vmatpush.msra.mxu0 %v24
  %81 = vmatmul.f32.gmra.mxu0 %v57
  %v82 = vpop.f32.mrf.mxu0
  %v83 = vadd.f32 0.0, %v82
  %84 = vmatmul.f32.gmra.mxu0 %v59
  %v85 = vpop.f32.mrf.mxu0
  %v86 = vadd.f32 0.0, %v85
  %87 = vmatmul.f32.gmra.mxu0 %v61
  %v88 = vpop.f32.mrf.mxu0
  %v89 = vadd.f32 0.0, %v88
  %90 = vmatmul.f32.gmra.mxu0 %v63
  %v91 = vpop.f32.mrf.mxu0
  %v92 = vadd.f32 0.0, %v91
  %93 = vdwg.mxu0
  %94 = vmatpush.msra.mxu0 %v55
  %95 = vmatpush.msra.mxu0 %v54
  %96 = vmatpush.msra.mxu0 %v53
  %97 = vmatpush.msra.mxu0 %v52
  %98 = vmatpush.msra.mxu0 %v51
  %99 = vmatpush.msra.mxu0 %v50
  %100 = vmatpush.msra.mxu0 %v49
  %101 = vmatpush.msra.mxu0 %v48
  %102 = vmatpush.msra.mxu0 %v47
  %103 = vmatpush.msra.mxu0 %v46
  %104 = vmatpush.msra.mxu0 %v45
  %105 = vmatpush.msra.mxu0 %v44
  %106 = vmatpush.msra.mxu0 %v43
  %107 = vmatpush.msra.mxu0 %v42
  %108 = vmatpush.msra.mxu0 %v41
  %109 = vmatpush.msra.mxu0 %v40
  %110 = vmatmul.f32.gmra.mxu0 %v58
  %v111 = vpop.f32.mrf.mxu0
  %v112 = vadd.f32 %v83, %v111
  %113 = vmatmul.f32.gmra.mxu0 %v60
  %v114 = vpop.f32.mrf.mxu0
  %v115 = vadd.f32 %v86, %v114
  %116 = vmatmul.f32.gmra.mxu0 %v62
  %v117 = vpop.f32.mrf.mxu0
  %v118 = vadd.f32 %v89, %v117
  %119 = vmatmul.f32.gmra.mxu0 %v64
  %v120 = vpop.f32.mrf.mxu0
  %v121 = vadd.f32 %v92, %v120
  %122 = vdwg.mxu0
  %v123 = vld [vmem:[%s2] sm:$0xff]
  %vm124 = vcmask 252928
  %v126 = vsel %vm124, %v123, 0
  %vm128 = vcmask 1046528
  %v130 = vsel %vm128, %v121, 0
  %132 = vmatpush.msra.mxu0 0.0
  %133 = vmatpush.msra.mxu0 0.0
  %134 = vmatpush.msra.mxu0 0.0
  %135 = vmatpush.msra.mxu0 0.0
  %136 = vmatpush.msra.mxu0 0.0
  %137 = vmatpush.msra.mxu0 0.0
  %138 = vmatpush.msra.mxu0 0.0
  %139 = vmatpush.msra.mxu0 0.0
  %140 = vmatpush.msra.mxu0 0.0
  %141 = vmatpush.msra.mxu0 0.0
  %142 = vmatpush.msra.mxu0 0.0
  %143 = vmatpush.msra.mxu0 0.0
  %144 = vmatpush.msra.mxu0 %v130
  %145 = vmatpush.msra.mxu0 %v118
  %146 = vmatpush.msra.mxu0 %v115
  %147 = vmatpush.msra.mxu0 %v112
  %148 = vmatmul.f32.gmra.mxu0 %v126
  %v149 = vpop.f32.mrf.mxu0
  %v150 = vadd.f32 0.0, %v149
  %151 = vdwg.mxu0
  %v153 = vperm.slane %v56, 0
  %v155 = vadd.f32 %v115, %v153
  %s156 = sld [smem:[#allocation2]]
  %v157 = vlaneseq
  %v158 = vand.u32 %v157, 127
  %v159 = vstv %s156
  %vm160 = vcmp.eq.s32.totalorder %v158, %v159
  %v161 = vsel %vm160, 1, 0
  %v162 = vcvt.s32.f32 %v161
  %v163 = vmul.f32 %v155, %v162
  %vm164 = vcmask 31751
  %v165 = vsel %vm164, %v163, 0.0
  %166 = vadd.xlane.f32.xlu0 %v165
  %v167 = vpop.xlane.xlu0 %166
  %v168 = vperm.slane %v167, 7
  %v169 = vld [vmem:[%s5] sm:$0xff]
  %v170 = vld [vmem:[%s5 + $0x8] sm:$0xff]
  %v171 = vld [vmem:[%s5 + $0x10] sm:$0xff]
  %v172 = vld [vmem:[%s5 + $0x18] sm:$0xff]
  %v173 = vld [vmem:[%s5 + $0x20] sm:$0xff]
  %v174 = vld [vmem:[%s5 + $0x28] sm:$0xff]
  %vm175 = vcmp.lt.f32.partialorder %v169, 0.5
  %v176 = vsel %vm175, 1, 0
  %v177 = vcvt.s32.f32 %v176
  %vm178 = vcmask 64512
  %v180 = vsel %vm178, %v177, 0
  %182 = vmatpush.msra.mxu0 0.0
  %183 = vmatpush.msra.mxu0 0.0
  %184 = vmatpush.msra.mxu0 0.0
  %185 = vmatpush.msra.mxu0 0.0
  %186 = vmatpush.msra.mxu0 0.0
  %187 = vmatpush.msra.mxu0 0.0
  %188 = vmatpush.msra.mxu0 0.0
  %189 = vmatpush.msra.mxu0 0.0
  %190 = vmatpush.msra.mxu0 0.0
  %191 = vmatpush.msra.mxu0 0.0
  %192 = vmatpush.msra.mxu0 0.0
  %193 = vmatpush.msra.mxu0 0.0
  %194 = vmatpush.msra.mxu0 0.0
  %195 = vmatpush.msra.mxu0 0.0
  %196 = vmatpush.msra.mxu0 0.0
  %197 = vmatpush.msra.mxu0 %v150
  %198 = vmatmul.f32.gmra.mxu0 %v180
  %v199 = vpop.f32.mrf.mxu0
  %v200 = vadd.f32 %v153, %v199
  %201 = vdwg.mxu0
  %v202 = vmul.f32 %v200, %v162
  %vm203 = vcmask 31744
  %v204 = vsel %vm203, %v202, 0.0
  %205 = vadd.xlane.f32.xlu0 %v204
  %v206 = vpop.xlane.xlu0 %205
  %v207 = vsub.f32 %v168, %v206
  %v208 = vand.u32 2147483647, %v207
  %v209 = vsub.f32 0.0, %v208
  %v210 = vsel %vm178, %v177, 0.0
  %211 = vadd.xlane.f32.xlu0 %v210
  %v212 = vpop.xlane.xlu0 %211
  %v213 = vrcp.pop 8.0
  %v214 = vmul.f32 8.0, %v213
  %v215 = vsub.f32 1.0, %v214
  %v216 = vmul.f32 %v213, %v215
  %v217 = vadd.f32 %v213, %v216
  %vm218 = vweird.f32 %v213
  %v219 = vsel %vm218, %v213, %v217
  %v220 = vmul.f32 %v212, %v219
  %v221 = vsub.f32 %v220, 0.05
  %v222 = vmax.f32 %v221, 0.0
  %v223 = vmul.f32 %v222, 0.01
  %v224 = vsub.f32 %v209, %v223
  %v225 = vrot.slane %v224, 4
  %v226 = vadd.f32 %v224, %v225
  %v227 = vrot.slane %v226, 2
  %v228 = vadd.f32 %v226, %v227
  %v229 = vrot.slane %v228, 1
  %v230 = vadd.f32 %v228, %v229
  %v231 = vmul.f32 %v230, %v219
  %v232 = vmul.f32 %v231, 0.1
  %v233 = vadd.f32 %v232, 0.0
  %v234 = vsub.f32 %v224, %v233
  %v235 = vsub.f32 %v177, 0.5
  %v236 = vmul.f32 %v234, %v235
  %v237 = vsel %vm178, %v236, 0.0
  %v238 = vrot.slane %v237, 4
  %v239 = vadd.f32 %v237, %v238
  %v240 = vrot.slane %v239, 2
  %v241 = vadd.f32 %v239, %v240
  %v242 = vrot.slane %v241, 1
  %v243 = vadd.f32 %v241, %v242
  %v244 = vmul.f32 %v243, %v219
  %v245 = vsub.f32 0.0, %v244
  %v246 = vmul.f32 %v245, 0.1
  %v247 = vadd.f32 %v246, 0.0
  %v248 = vmul.f32 %v245, 0.001
  %v249 = vmul.f32 %v248, %v245
  %v250 = vadd.f32 %v249, 0.0
  %v251 = vrcp.pop 0.1
  %v252 = vmul.f32 0.1, %v251
  %v253 = vsub.f32 1.0, %v252
  %v254 = vmul.f32 %v251, %v253
  %v255 = vadd.f32 %v251, %v254
  %vm256 = vweird.f32 %v251
  %v257 = vsel %vm256, %v251, %v255
  %v258 = vmul.f32 %v247, %v257
  %v259 = vrcp.pop 0.001
  %v260 = vmul.f32 0.001, %v259
  %v261 = vsub.f32 1.0, %v260
  %v262 = vmul.f32 %v259, %v261
  %v263 = vadd.f32 %v259, %v262
  %vm264 = vweird.f32 %v259
  %v265 = vsel %vm264, %v259, %v263
  %v266 = vmul.f32 %v250, %v265
  %v267 = vmul.f32 %v258, 0.0001
  %v268 = vrsqrt.pop %v266
  %v269 = vmul.f32 %v268, %v266
  %v270 = vmul.f32 %v269, %v268
  %v271 = vmul.f32 0.5, %v270
  %v272 = vsub.f32 1.5, %v271
  %v273 = vmul.f32 %v268, %v272
  %v274 = vmul.f32 %v266, %v273
  %vm275 = vcmp.eq.f32.partialorder %v266, inf
  %v276 = vsel %vm275, %v266, %v274
  %vm277 = vcmp.eq.f32.partialorder %v266, 0.0
  %v278 = vand.u32 %v266, 2147483648
  %v279 = vsel %vm277, %v278, %v276
  %v280 = vadd.f32 %v279, 1e-08
  %v281 = vrcp.pop %v280
  %v282 = vmul.f32 %v280, %v281
  %v283 = vsub.f32 1.0, %v282
  %v284 = vmul.f32 %v281, %v283
  %v285 = vadd.f32 %v281, %v284
  %vm286 = vweird.f32 %v280
  %vm287 = vweird.f32 %v281
  %vm288 = vmor %vm286, %vm287
  %v289 = vsel %vm288, %v281, %v285
  %v290 = vand.u32 2147483647, %v280
  %vm291 = vcmp.eq.f32.partialorder %v290, 8.507059e+37
  %v292 = vand.u32 %v280, 2147483648
  %v293 = vor.u32 1.1754944e-38, %v292
  %v294 = vsel %vm291, %v293, %v289
  %v295 = vmul.f32 %v267, %v294
  %v296 = vsub.f32 0.0, %v295
  %v297 = vxor.u32 %v296, 2147483648
  %v298 = vmul.f32 %v297, 1.442695
  %v299 = vpow.pop %v298
  %v300 = vadd.f32 %v299, 1.0
  %v301 = vrcp.pop %v300
  %v302 = vmul.f32 %v300, %v301
  %v303 = vsub.f32 1.0, %v302
  %v304 = vmul.f32 %v301, %v303
  %v305 = vadd.f32 %v301, %v304
  %vm306 = vweird.f32 %v300
  %vm307 = vweird.f32 %v301
  %vm308 = vmor %vm306, %vm307
  %v309 = vsel %vm308, %v301, %v305
  %v310 = vand.u32 2147483647, %v300
  %vm311 = vcmp.eq.f32.partialorder %v310, 8.507059e+37
  %v312 = vand.u32 %v300, 2147483648
  %v313 = vor.u32 1.1754944e-38, %v312
  %v314 = vsel %vm311, %v313, %v309
  %v315 = vmul.f32 1.0, %v314
  %vm316 = vcmp.lt.f32.partialorder %v170, %v315
  %v317 = vsel %vm316, 1, 0
  %v318 = vcvt.s32.f32 %v317
  %v320 = vsel %vm178, %v318, 0
  %322 = vmatpush.msra.mxu0 0.0
  %323 = vmatpush.msra.mxu0 0.0
  %324 = vmatpush.msra.mxu0 0.0
  %325 = vmatpush.msra.mxu0 0.0
  %326 = vmatpush.msra.mxu0 0.0
  %327 = vmatpush.msra.mxu0 0.0
  %328 = vmatpush.msra.mxu0 0.0
  %329 = vmatpush.msra.mxu0 0.0
  %330 = vmatpush.msra.mxu0 0.0
  %331 = vmatpush.msra.mxu0 0.0
  %332 = vmatpush.msra.mxu0 0.0
  %333 = vmatpush.msra.mxu0 0.0
  %334 = vmatpush.msra.mxu0 0.0
  %335 = vmatpush.msra.mxu0 0.0
  %336 = vmatpush.msra.mxu0 0.0
  %337 = vmatpush.msra.mxu0 %v150
  %338 = vmatmul.f32.gmra.mxu0 %v320
  %v339 = vpop.f32.mrf.mxu0
  %v340 = vadd.f32 %v153, %v339
  %341 = vdwg.mxu0
  %v342 = vmul.f32 %v340, %v162
  %v343 = vsel %vm203, %v342, 0.0
  %344 = vadd.xlane.f32.xlu0 %v343
  %v345 = vpop.xlane.xlu0 %344
  %v346 = vsub.f32 %v168, %v345
  %v347 = vand.u32 2147483647, %v346
  %v348 = vsub.f32 0.0, %v347
  %v349 = vsel %vm178, %v318, 0.0
  %350 = vadd.xlane.f32.xlu0 %v349
  %v351 = vpop.xlane.xlu0 %350
  %v352 = vmul.f32 %v351, %v219
  %v353 = vsub.f32 %v352, 0.05
  %v354 = vmax.f32 %v353, 0.0
  %v355 = vmul.f32 %v354, 0.01
  %v356 = vsub.f32 %v348, %v355
  %v357 = vrot.slane %v356, 4
  %v358 = vadd.f32 %v356, %v357
  %v359 = vrot.slane %v358, 2
  %v360 = vadd.f32 %v358, %v359
  %v361 = vrot.slane %v360, 1
  %v362 = vadd.f32 %v360, %v361
  %v363 = vmul.f32 %v362, %v219
  %v364 = vmul.f32 %v233, 0.9
  %v365 = vmul.f32 %v363, 0.1
  %v366 = vadd.f32 %v364, %v365
  %v367 = vsub.f32 %v356, %v366
  %v368 = vsub.f32 %v318, %v315
  %v369 = vmul.f32 %v367, %v368
  %v370 = vsel %vm178, %v369, 0.0
  %v371 = vrot.slane %v370, 4
  %v372 = vadd.f32 %v370, %v371
  %v373 = vrot.slane %v372, 2
  %v374 = vadd.f32 %v372, %v373
  %v375 = vrot.slane %v374, 1
  %v376 = vadd.f32 %v374, %v375
  %v377 = vmul.f32 %v376, %v219
  %v378 = vsub.f32 0.0, %v377
  %v379 = vmul.f32 %v247, 0.9
  %v380 = vmul.f32 %v378, 0.1
  %v381 = vadd.f32 %v379, %v380
  %v382 = vmul.f32 %v250, 0.999
  %v383 = vmul.f32 %v378, 0.001
  %v384 = vmul.f32 %v383, %v378
  %v385 = vadd.f32 %v382, %v384
  %v386 = vrcp.pop 0.19
  %v387 = vmul.f32 0.19, %v386
  %v388 = vsub.f32 1.0, %v387
  %v389 = vmul.f32 %v386, %v388
  %v390 = vadd.f32 %v386, %v389
  %vm391 = vweird.f32 %v386
  %v392 = vsel %vm391, %v386, %v390
  %v393 = vmul.f32 %v381, %v392
  %v394 = vrcp.pop 0.001999
  %v395 = vmul.f32 0.001999, %v394
  %v396 = vsub.f32 1.0, %v395
  %v397 = vmul.f32 %v394, %v396
  %v398 = vadd.f32 %v394, %v397
  %vm399 = vweird.f32 %v394
  %v400 = vsel %vm399, %v394, %v398
  %v401 = vmul.f32 %v385, %v400
  %v402 = vmul.f32 %v393, 0.0001
  %v403 = vrsqrt.pop %v401
  %v404 = vmul.f32 %v403, %v401
  %v405 = vmul.f32 %v404, %v403
  %v406 = vmul.f32 0.5, %v405
  %v407 = vsub.f32 1.5, %v406
  %v408 = vmul.f32 %v403, %v407
  %v409 = vmul.f32 %v401, %v408
  %vm410 = vcmp.eq.f32.partialorder %v401, inf
  %v411 = vsel %vm410, %v401, %v409
  %vm412 = vcmp.eq.f32.partialorder %v401, 0.0
  %v413 = vand.u32 %v401, 2147483648
  %v414 = vsel %vm412, %v413, %v411
  %v415 = vadd.f32 %v414, 1e-08
  %v416 = vrcp.pop %v415
  %v417 = vmul.f32 %v415, %v416
  %v418 = vsub.f32 1.0, %v417
  %v419 = vmul.f32 %v416, %v418
  %v420 = vadd.f32 %v416, %v419
  %vm421 = vweird.f32 %v415
  %vm422 = vweird.f32 %v416
  %vm423 = vmor %vm421, %vm422
  %v424 = vsel %vm423, %v416, %v420
  %v425 = vand.u32 2147483647, %v415
  %vm426 = vcmp.eq.f32.partialorder %v425, 8.507059e+37
  %v427 = vand.u32 %v415, 2147483648
  %v428 = vor.u32 1.1754944e-38, %v427
  %v429 = vsel %vm426, %v428, %v424
  %v430 = vmul.f32 %v402, %v429
  %v431 = vsub.f32 %v296, %v430
  %v432 = vxor.u32 %v431, 2147483648
  %v433 = vmul.f32 %v432, 1.442695
  %v434 = vpow.pop %v433
  %v435 = vadd.f32 %v434, 1.0
  %v436 = vrcp.pop %v435
  %v437 = vmul.f32 %v435, %v436
  %v438 = vsub.f32 1.0, %v437
  %v439 = vmul.f32 %v436, %v438
  %v440 = vadd.f32 %v436, %v439
  %vm441 = vweird.f32 %v435
  %vm442 = vweird.f32 %v436
  %vm443 = vmor %vm441, %vm442
  %v444 = vsel %vm443, %v436, %v440
  %v445 = vand.u32 2147483647, %v435
  %vm446 = vcmp.eq.f32.partialorder %v445, 8.507059e+37
  %v447 = vand.u32 %v435, 2147483648
  %v448 = vor.u32 1.1754944e-38, %v447
  %v449 = vsel %vm446, %v448, %v444
  %v450 = vmul.f32 1.0, %v449
  %vm451 = vcmp.lt.f32.partialorder %v171, %v450
  %v452 = vsel %vm451, 1, 0
  %v453 = vcvt.s32.f32 %v452
  %v455 = vsel %vm178, %v453, 0
  %457 = vmatpush.msra.mxu0 0.0
  %458 = vmatpush.msra.mxu0 0.0
  %459 = vmatpush.msra.mxu0 0.0
  %460 = vmatpush.msra.mxu0 0.0
  %461 = vmatpush.msra.mxu0 0.0
  %462 = vmatpush.msra.mxu0 0.0
  %463 = vmatpush.msra.mxu0 0.0
  %464 = vmatpush.msra.mxu0 0.0
  %465 = vmatpush.msra.mxu0 0.0
  %466 = vmatpush.msra.mxu0 0.0
  %467 = vmatpush.msra.mxu0 0.0
  %468 = vmatpush.msra.mxu0 0.0
  %469 = vmatpush.msra.mxu0 0.0
  %470 = vmatpush.msra.mxu0 0.0
  %471 = vmatpush.msra.mxu0 0.0
  %472 = vmatpush.msra.mxu0 %v150
  %473 = vmatmul.f32.gmra.mxu0 %v455
  %v474 = vpop.f32.mrf.mxu0
  %v475 = vadd.f32 %v153, %v474
  %476 = vdwg.mxu0
  %v477 = vmul.f32 %v475, %v162
  %v478 = vsel %vm203, %v477, 0.0
  %479 = vadd.xlane.f32.xlu0 %v478
  %v480 = vpop.xlane.xlu0 %479
  %v481 = vsub.f32 %v168, %v480
  %v482 = vand.u32 2147483647, %v481
  %v483 = vsub.f32 0.0, %v482
  %v484 = vsel %vm178, %v453, 0.0
  %485 = vadd.xlane.f32.xlu0 %v484
  %v486 = vpop.xlane.xlu0 %485
  %v487 = vmul.f32 %v486, %v219
  %v488 = vsub.f32 %v487, 0.05
  %v489 = vmax.f32 %v488, 0.0
  %v490 = vmul.f32 %v489, 0.01
  %v491 = vsub.f32 %v483, %v490
  %v492 = vrot.slane %v491, 4
  %v493 = vadd.f32 %v491, %v492
  %v494 = vrot.slane %v493, 2
  %v495 = vadd.f32 %v493, %v494
  %v496 = vrot.slane %v495, 1
  %v497 = vadd.f32 %v495, %v496
  %v498 = vmul.f32 %v497, %v219
  %v499 = vmul.f32 %v366, 0.9
  %v500 = vmul.f32 %v498, 0.1
  %v501 = vadd.f32 %v499, %v500
  %v502 = vsub.f32 %v491, %v501
  %v503 = vsub.f32 %v453, %v450
  %v504 = vmul.f32 %v502, %v503
  %v505 = vsel %vm178, %v504, 0.0
  %v506 = vrot.slane %v505, 4
  %v507 = vadd.f32 %v505, %v506
  %v508 = vrot.slane %v507, 2
  %v509 = vadd.f32 %v507, %v508
  %v510 = vrot.slane %v509, 1
  %v511 = vadd.f32 %v509, %v510
  %v512 = vmul.f32 %v511, %v219
  %v513 = vsub.f32 0.0, %v512
  %v514 = vmul.f32 %v381, 0.9
  %v515 = vmul.f32 %v513, 0.1
  %v516 = vadd.f32 %v514, %v515
  %v517 = vmul.f32 %v385, 0.999
  %v518 = vmul.f32 %v513, 0.001
  %v519 = vmul.f32 %v518, %v513
  %v520 = vadd.f32 %v517, %v519
  %v521 = vrcp.pop 0.271
  %v522 = vmul.f32 0.271, %v521
  %v523 = vsub.f32 1.0, %v522
  %v524 = vmul.f32 %v521, %v523
  %v525 = vadd.f32 %v521, %v524
  %vm526 = vweird.f32 %v521
  %v527 = vsel %vm526, %v521, %v525
  %v528 = vmul.f32 %v516, %v527
  %v529 = vrcp.pop 0.002997001
  %v530 = vmul.f32 0.002997001, %v529
  %v531 = vsub.f32 1.0, %v530
  %v532 = vmul.f32 %v529, %v531
  %v533 = vadd.f32 %v529, %v532
  %vm534 = vweird.f32 %v529
  %v535 = vsel %vm534, %v529, %v533
  %v536 = vmul.f32 %v520, %v535
  %v537 = vmul.f32 %v528, 0.0001
  %v538 = vrsqrt.pop %v536
  %v539 = vmul.f32 %v538, %v536
  %v540 = vmul.f32 %v539, %v538
  %v541 = vmul.f32 0.5, %v540
  %v542 = vsub.f32 1.5, %v541
  %v543 = vmul.f32 %v538, %v542
  %v544 = vmul.f32 %v536, %v543
  %vm545 = vcmp.eq.f32.partialorder %v536, inf
  %v546 = vsel %vm545, %v536, %v544
  %vm547 = vcmp.eq.f32.partialorder %v536, 0.0
  %v548 = vand.u32 %v536, 2147483648
  %v549 = vsel %vm547, %v548, %v546
  %v550 = vadd.f32 %v549, 1e-08
  %v551 = vrcp.pop %v550
  %v552 = vmul.f32 %v550, %v551
  %v553 = vsub.f32 1.0, %v552
  %v554 = vmul.f32 %v551, %v553
  %v555 = vadd.f32 %v551, %v554
  %vm556 = vweird.f32 %v550
  %vm557 = vweird.f32 %v551
  %vm558 = vmor %vm556, %vm557
  %v559 = vsel %vm558, %v551, %v555
  %v560 = vand.u32 2147483647, %v550
  %vm561 = vcmp.eq.f32.partialorder %v560, 8.507059e+37
  %v562 = vand.u32 %v550, 2147483648
  %v563 = vor.u32 1.1754944e-38, %v562
  %v564 = vsel %vm561, %v563, %v559
  %v565 = vmul.f32 %v537, %v564
  %v566 = vsub.f32 %v431, %v565
  %v567 = vxor.u32 %v566, 2147483648
  %v568 = vmul.f32 %v567, 1.442695
  %v569 = vpow.pop %v568
  %v570 = vadd.f32 %v569, 1.0
  %v571 = vrcp.pop %v570
  %v572 = vmul.f32 %v570, %v571
  %v573 = vsub.f32 1.0, %v572
  %v574 = vmul.f32 %v571, %v573
  %v575 = vadd.f32 %v571, %v574
  %vm576 = vweird.f32 %v570
  %vm577 = vweird.f32 %v571
  %vm578 = vmor %vm576, %vm577
  %v579 = vsel %vm578, %v571, %v575
  %v580 = vand.u32 2147483647, %v570
  %vm581 = vcmp.eq.f32.partialorder %v580, 8.507059e+37
  %v582 = vand.u32 %v570, 2147483648
  %v583 = vor.u32 1.1754944e-38, %v582
  %v584 = vsel %vm581, %v583, %v579
  %v585 = vmul.f32 1.0, %v584
  %vm586 = vcmp.lt.f32.partialorder %v172, %v585
  %v587 = vsel %vm586, 1, 0
  %v588 = vcvt.s32.f32 %v587
  %v590 = vsel %vm178, %v588, 0
  %592 = vmatpush.msra.mxu0 0.0
  %593 = vmatpush.msra.mxu0 0.0
  %594 = vmatpush.msra.mxu0 0.0
  %595 = vmatpush.msra.mxu0 0.0
  %596 = vmatpush.msra.mxu0 0.0
  %597 = vmatpush.msra.mxu0 0.0
  %598 = vmatpush.msra.mxu0 0.0
  %599 = vmatpush.msra.mxu0 0.0
  %600 = vmatpush.msra.mxu0 0.0
  %601 = vmatpush.msra.mxu0 0.0
  %602 = vmatpush.msra.mxu0 0.0
  %603 = vmatpush.msra.mxu0 0.0
  %604 = vmatpush.msra.mxu0 0.0
  %605 = vmatpush.msra.mxu0 0.0
  %606 = vmatpush.msra.mxu0 0.0
  %607 = vmatpush.msra.mxu0 %v150
  %608 = vmatmul.f32.gmra.mxu0 %v590
  %v609 = vpop.f32.mrf.mxu0
  %v610 = vadd.f32 %v153, %v609
  %611 = vdwg.mxu0
  %v612 = vmul.f32 %v610, %v162
  %v613 = vsel %vm203, %v612, 0.0
  %614 = vadd.xlane.f32.xlu0 %v613
  %v615 = vpop.xlane.xlu0 %614
  %v616 = vsub.f32 %v168, %v615
  %v617 = vand.u32 2147483647, %v616
  %v618 = vsub.f32 0.0, %v617
  %v619 = vsel %vm178, %v588, 0.0
  %620 = vadd.xlane.f32.xlu0 %v619
  %v621 = vpop.xlane.xlu0 %620
  %v622 = vmul.f32 %v621, %v219
  %v623 = vsub.f32 %v622, 0.05
  %v624 = vmax.f32 %v623, 0.0
  %v625 = vmul.f32 %v624, 0.01
  %v626 = vsub.f32 %v618, %v625
  %v627 = vrot.slane %v626, 4
  %v628 = vadd.f32 %v626, %v627
  %v629 = vrot.slane %v628, 2
  %v630 = vadd.f32 %v628, %v629
  %v631 = vrot.slane %v630, 1
  %v632 = vadd.f32 %v630, %v631
  %v633 = vmul.f32 %v632, %v219
  %v634 = vmul.f32 %v501, 0.9
  %v635 = vmul.f32 %v633, 0.1
  %v636 = vadd.f32 %v634, %v635
  %v637 = vsub.f32 %v626, %v636
  %v638 = vsub.f32 %v588, %v585
  %v639 = vmul.f32 %v637, %v638
  %v640 = vsel %vm178, %v639, 0.0
  %v641 = vrot.slane %v640, 4
  %v642 = vadd.f32 %v640, %v641
  %v643 = vrot.slane %v642, 2
  %v644 = vadd.f32 %v642, %v643
  %v645 = vrot.slane %v644, 1
  %v646 = vadd.f32 %v644, %v645
  %v647 = vmul.f32 %v646, %v219
  %v648 = vsub.f32 0.0, %v647
  %v649 = vmul.f32 %v516, 0.9
  %v650 = vmul.f32 %v648, 0.1
  %v651 = vadd.f32 %v649, %v650
  %v652 = vmul.f32 %v520, 0.999
  %v653 = vmul.f32 %v648, 0.001
  %v654 = vmul.f32 %v653, %v648
  %v655 = vadd.f32 %v652, %v654
  %v656 = vrcp.pop 0.3439
  %v657 = vmul.f32 0.3439, %v656
  %v658 = vsub.f32 1.0, %v657
  %v659 = vmul.f32 %v656, %v658
  %v660 = vadd.f32 %v656, %v659
  %vm661 = vweird.f32 %v656
  %v662 = vsel %vm661, %v656, %v660
  %v663 = vmul.f32 %v651, %v662
  %v664 = vrcp.pop 0.003994004
  %v665 = vmul.f32 0.003994004, %v664
  %v666 = vsub.f32 1.0, %v665
  %v667 = vmul.f32 %v664, %v666
  %v668 = vadd.f32 %v664, %v667
  %vm669 = vweird.f32 %v664
  %v670 = vsel %vm669, %v664, %v668
  %v671 = vmul.f32 %v655, %v670
  %v672 = vmul.f32 %v663, 0.0001
  %v673 = vrsqrt.pop %v671
  %v674 = vmul.f32 %v673, %v671
  %v675 = vmul.f32 %v674, %v673
  %v676 = vmul.f32 0.5, %v675
  %v677 = vsub.f32 1.5, %v676
  %v678 = vmul.f32 %v673, %v677
  %v679 = vmul.f32 %v671, %v678
  %vm680 = vcmp.eq.f32.partialorder %v671, inf
  %v681 = vsel %vm680, %v671, %v679
  %vm682 = vcmp.eq.f32.partialorder %v671, 0.0
  %v683 = vand.u32 %v671, 2147483648
  %v684 = vsel %vm682, %v683, %v681
  %v685 = vadd.f32 %v684, 1e-08
  %v686 = vrcp.pop %v685
  %v687 = vmul.f32 %v685, %v686
  %v688 = vsub.f32 1.0, %v687
  %v689 = vmul.f32 %v686, %v688
  %v690 = vadd.f32 %v686, %v689
  %vm691 = vweird.f32 %v685
  %vm692 = vweird.f32 %v686
  %vm693 = vmor %vm691, %vm692
  %v694 = vsel %vm693, %v686, %v690
  %v695 = vand.u32 2147483647, %v685
  %vm696 = vcmp.eq.f32.partialorder %v695, 8.507059e+37
  %v697 = vand.u32 %v685, 2147483648
  %v698 = vor.u32 1.1754944e-38, %v697
  %v699 = vsel %vm696, %v698, %v694
  %v700 = vmul.f32 %v672, %v699
  %v701 = vsub.f32 %v566, %v700
  %v702 = vxor.u32 %v701, 2147483648
  %v703 = vmul.f32 %v702, 1.442695
  %v704 = vpow.pop %v703
  %v705 = vadd.f32 %v704, 1.0
  %v706 = vrcp.pop %v705
  %v707 = vmul.f32 %v705, %v706
  %v708 = vsub.f32 1.0, %v707
  %v709 = vmul.f32 %v706, %v708
  %v710 = vadd.f32 %v706, %v709
  %vm711 = vweird.f32 %v705
  %vm712 = vweird.f32 %v706
  %vm713 = vmor %vm711, %vm712
  %v714 = vsel %vm713, %v706, %v710
  %v715 = vand.u32 2147483647, %v705
  %vm716 = vcmp.eq.f32.partialorder %v715, 8.507059e+37
  %v717 = vand.u32 %v705, 2147483648
  %v718 = vor.u32 1.1754944e-38, %v717
  %v719 = vsel %vm716, %v718, %v714
  %v720 = vmul.f32 1.0, %v719
  %vm721 = vcmp.lt.f32.partialorder %v173, %v720
  %v722 = vsel %vm721, 1, 0
  %v723 = vcvt.s32.f32 %v722
  %v725 = vsel %vm178, %v723, 0
  %727 = vmatpush.msra.mxu0 0.0
  %728 = vmatpush.msra.mxu0 0.0
  %729 = vmatpush.msra.mxu0 0.0
  %730 = vmatpush.msra.mxu0 0.0
  %731 = vmatpush.msra.mxu0 0.0
  %732 = vmatpush.msra.mxu0 0.0
  %733 = vmatpush.msra.mxu0 0.0
  %734 = vmatpush.msra.mxu0 0.0
  %735 = vmatpush.msra.mxu0 0.0
  %736 = vmatpush.msra.mxu0 0.0
  %737 = vmatpush.msra.mxu0 0.0
  %738 = vmatpush.msra.mxu0 0.0
  %739 = vmatpush.msra.mxu0 0.0
  %740 = vmatpush.msra.mxu0 0.0
  %741 = vmatpush.msra.mxu0 0.0
  %742 = vmatpush.msra.mxu0 %v150
  %743 = vmatmul.f32.gmra.mxu0 %v725
  %v744 = vpop.f32.mrf.mxu0
  %v745 = vadd.f32 %v153, %v744
  %746 = vdwg.mxu0
  %v747 = vmul.f32 %v745, %v162
  %v748 = vsel %vm203, %v747, 0.0
  %749 = vadd.xlane.f32.xlu0 %v748
  %v750 = vpop.xlane.xlu0 %749
  %v751 = vsub.f32 %v168, %v750
  %v752 = vand.u32 2147483647, %v751
  %v753 = vsub.f32 0.0, %v752
  %v754 = vsel %vm178, %v723, 0.0
  %755 = vadd.xlane.f32.xlu0 %v754
  %v756 = vpop.xlane.xlu0 %755
  %v757 = vmul.f32 %v756, %v219
  %v758 = vsub.f32 %v757, 0.05
  %v759 = vmax.f32 %v758, 0.0
  %v760 = vmul.f32 %v759, 0.01
  %v761 = vsub.f32 %v753, %v760
  %v762 = vrot.slane %v761, 4
  %v763 = vadd.f32 %v761, %v762
  %v764 = vrot.slane %v763, 2
  %v765 = vadd.f32 %v763, %v764
  %v766 = vrot.slane %v765, 1
  %v767 = vadd.f32 %v765, %v766
  %v768 = vmul.f32 %v767, %v219
  %v769 = vmul.f32 %v636, 0.9
  %v770 = vmul.f32 %v768, 0.1
  %v771 = vadd.f32 %v769, %v770
  %v772 = vsub.f32 %v761, %v771
  %v773 = vsub.f32 %v723, %v720
  %v774 = vmul.f32 %v772, %v773
  %v775 = vsel %vm178, %v774, 0.0
  %v776 = vrot.slane %v775, 4
  %v777 = vadd.f32 %v775, %v776
  %v778 = vrot.slane %v777, 2
  %v779 = vadd.f32 %v777, %v778
  %v780 = vrot.slane %v779, 1
  %v781 = vadd.f32 %v779, %v780
  %v782 = vmul.f32 %v781, %v219
  %v783 = vsub.f32 0.0, %v782
  %v784 = vmul.f32 %v651, 0.9
  %v785 = vmul.f32 %v783, 0.1
  %v786 = vadd.f32 %v784, %v785
  %v787 = vmul.f32 %v655, 0.999
  %v788 = vmul.f32 %v783, 0.001
  %v789 = vmul.f32 %v788, %v783
  %v790 = vadd.f32 %v787, %v789
  %v791 = vrcp.pop 0.40951
  %v792 = vmul.f32 0.40951, %v791
  %v793 = vsub.f32 1.0, %v792
  %v794 = vmul.f32 %v791, %v793
  %v795 = vadd.f32 %v791, %v794
  %vm796 = vweird.f32 %v791
  %v797 = vsel %vm796, %v791, %v795
  %v798 = vmul.f32 %v786, %v797
  %v799 = vrcp.pop 0.00499001
  %v800 = vmul.f32 0.00499001, %v799
  %v801 = vsub.f32 1.0, %v800
  %v802 = vmul.f32 %v799, %v801
  %v803 = vadd.f32 %v799, %v802
  %vm804 = vweird.f32 %v799
  %v805 = vsel %vm804, %v799, %v803
  %v806 = vmul.f32 %v790, %v805
  %v807 = vmul.f32 %v798, 0.0001
  %v808 = vrsqrt.pop %v806
  %v809 = vmul.f32 %v808, %v806
  %v810 = vmul.f32 %v809, %v808
  %v811 = vmul.f32 0.5, %v810
  %v812 = vsub.f32 1.5, %v811
  %v813 = vmul.f32 %v808, %v812
  %v814 = vmul.f32 %v806, %v813
  %vm815 = vcmp.eq.f32.partialorder %v806, inf
  %v816 = vsel %vm815, %v806, %v814
  %vm817 = vcmp.eq.f32.partialorder %v806, 0.0
  %v818 = vand.u32 %v806, 2147483648
  %v819 = vsel %vm817, %v818, %v816
  %v820 = vadd.f32 %v819, 1e-08
  %v821 = vrcp.pop %v820
  %v822 = vmul.f32 %v820, %v821
  %v823 = vsub.f32 1.0, %v822
  %v824 = vmul.f32 %v821, %v823
  %v825 = vadd.f32 %v821, %v824
  %vm826 = vweird.f32 %v820
  %vm827 = vweird.f32 %v821
  %vm828 = vmor %vm826, %vm827
  %v829 = vsel %vm828, %v821, %v825
  %v830 = vand.u32 2147483647, %v820
  %vm831 = vcmp.eq.f32.partialorder %v830, 8.507059e+37
  %v832 = vand.u32 %v820, 2147483648
  %v833 = vor.u32 1.1754944e-38, %v832
  %v834 = vsel %vm831, %v833, %v829
  %v835 = vmul.f32 %v807, %v834
  %v836 = vsub.f32 %v701, %v835
  %v837 = vxor.u32 %v836, 2147483648
  %v838 = vmul.f32 %v837, 1.442695
  %v839 = vpow.pop %v838
  %v840 = vadd.f32 %v839, 1.0
  %v841 = vrcp.pop %v840
  %v842 = vmul.f32 %v840, %v841
  %v843 = vsub.f32 1.0, %v842
  %v844 = vmul.f32 %v841, %v843
  %v845 = vadd.f32 %v841, %v844
  %vm846 = vweird.f32 %v840
  %vm847 = vweird.f32 %v841
  %vm848 = vmor %vm846, %vm847
  %v849 = vsel %vm848, %v841, %v845
  %v850 = vand.u32 2147483647, %v840
  %vm851 = vcmp.eq.f32.partialorder %v850, 8.507059e+37
  %v852 = vand.u32 %v840, 2147483648
  %v853 = vor.u32 1.1754944e-38, %v852
  %v854 = vsel %vm851, %v853, %v849
  %v855 = vmul.f32 1.0, %v854
  %vm856 = vcmp.lt.f32.partialorder %v174, %v855
  %v857 = vsel %vm856, 1, 0
  %v858 = vcvt.s32.f32 %v857
  %v860 = vsel %vm178, %v858, 0
  %862 = vmatpush.msra.mxu0 0.0
  %863 = vmatpush.msra.mxu0 0.0
  %864 = vmatpush.msra.mxu0 0.0
  %865 = vmatpush.msra.mxu0 0.0
  %866 = vmatpush.msra.mxu0 0.0
  %867 = vmatpush.msra.mxu0 0.0
  %868 = vmatpush.msra.mxu0 0.0
  %869 = vmatpush.msra.mxu0 0.0
  %870 = vmatpush.msra.mxu0 0.0
  %871 = vmatpush.msra.mxu0 0.0
  %872 = vmatpush.msra.mxu0 0.0
  %873 = vmatpush.msra.mxu0 0.0
  %874 = vmatpush.msra.mxu0 0.0
  %875 = vmatpush.msra.mxu0 0.0
  %876 = vmatpush.msra.mxu0 0.0
  %877 = vmatpush.msra.mxu0 %v150
  %878 = vmatmul.f32.gmra.mxu0 %v860
  %v879 = vpop.f32.mrf.mxu0
  %v880 = vadd.f32 %v153, %v879
  %881 = vdwg.mxu0
  %882 = vxpose.xlu0.b32.start [1/16] %v177, 128
  %883 = vxpose.xlu0.b32.cont [2/16] %v318, 128
  %884 = vxpose.xlu0.b32.cont [3/16] %v453, 128
  %885 = vxpose.xlu0.b32.cont [4/16] %v588, 128
  %886 = vxpose.xlu0.b32.cont [5/16] %v723, 128
  %887 = vxpose.xlu0.b32.cont [6/16] %v858, 128
  %888 = vxpose.xlu0.b32.cont [7/16] 0.0, 128
  %889 = vxpose.xlu0.b32.cont [8/16] 0.0, 128
  %890 = vxpose.xlu0.b32.cont [9/16] 0.0, 128
  %891 = vxpose.xlu0.b32.cont [10/16] 0.0, 128
  %892 = vxpose.xlu0.b32.cont [11/16] 0.0, 128
  %893 = vxpose.xlu0.b32.cont [12/16] 0.0, 128
  %894 = vxpose.xlu0.b32.cont [13/16] 0.0, 128
  %895 = vxpose.xlu0.b32.cont [14/16] 0.0, 128
  %896 = vxpose.xlu0.b32.cont [15/16] 0.0, 128
  %897 = vxpose.xlu0.b32.end [16/16] 0.0, 128
  %v898 = vpop.trf.xlu0
  %v899 = vpop.trf.xlu0
  %v900 = vpop.trf.xlu0
  %v901 = vpop.trf.xlu0
  %v902 = vpop.trf.xlu0
  %v903 = vpop.trf.xlu0
  %v904 = vpop.trf.xlu0
  %v905 = vpop.trf.xlu0
  %v906 = vpop.trf.xlu0
  %v907 = vpop.trf.xlu0
  %v908 = vpop.trf.xlu0
  %v909 = vpop.trf.xlu0
  %v910 = vpop.trf.xlu0
  %v911 = vpop.trf.xlu0
  %v912 = vpop.trf.xlu0
  %v913 = vpop.trf.xlu0
  %vm914 = vcmask 392192
  %v916 = vsel %vm914, %v898, 0
  %918 = vmatpush.msra.mxu0 0.0
  %919 = vmatpush.msra.mxu0 0.0
  %920 = vmatpush.msra.mxu0 0.0
  %921 = vmatpush.msra.mxu0 0.0
  %922 = vmatpush.msra.mxu0 0.0
  %923 = vmatpush.msra.mxu0 0.0
  %924 = vmatpush.msra.mxu0 0.0
  %925 = vmatpush.msra.mxu0 0.0
  %926 = vmatpush.msra.mxu0 0.0
  %927 = vmatpush.msra.mxu0 0.0
  %928 = vmatpush.msra.mxu0 %v880
  %929 = vmatpush.msra.mxu0 %v745
  %930 = vmatpush.msra.mxu0 %v610
  %931 = vmatpush.msra.mxu0 %v475
  %932 = vmatpush.msra.mxu0 %v340
  %933 = vmatpush.msra.mxu0 %v200
  %934 = vmatmul.f32.gmra.mxu0 %v916
  %v935 = vpop.f32.mrf.mxu0
  %v936 = vadd.f32 0.0, %v935
  %937 = vdwg.mxu0
  %938 = vst.msk [vmem:[%s6] sm:$0xff] %vm203, %v936
  // Predicated region
  $region26: #{fisurl_forward.1} parent=0 // pred_check
    _
  $region27: #{fisurl_forward.1} parent=0 // pred_check_branch
    %940 = sbr.rel (0) target = $region29
  $region28: #{fisurl_forward.1} parent=0 // pred_region
    _
  $region29: #{fisurl_forward.1} parent=0 // pred_fallthru
    _
  // Predicated region
  $region30: #{fisurl_forward.1} parent=0 // pred_check
    _
  $region31: #{fisurl_forward.1} parent=0 // pred_check_branch
    %942 = sbr.rel (0) target = $region33
  $region32: #{fisurl_forward.1} parent=0 // pred_region
    _
  $region33: #{fisurl_forward.1} parent=0 // pred_fallthru
    _

</llo_original>
